<compile_context>
chip_gen: v6e
topology: v6e:2x2x1
jax: 0.10.0
libtpu: 0.0.40
codegen_flags: <defaults>
</compile_context>

<pallas_src>
import math
import functools

import jax
import jax.numpy as jnp
from jax.experimental import pallas as pl
from jax.experimental.pallas import tpu as pltpu


def _layer_norm(x, gamma, beta, eps=1e-5):
    mean = jnp.mean(x, axis=-1, keepdims=True)
    var = jnp.mean((x - mean) ** 2, axis=-1, keepdims=True)
    return (x - mean) * jax.lax.rsqrt(var + eps) * gamma + beta


def _encoder_kernel(x_ref,
                    wqkv_ref, bqkv_ref,          # per-head fused QKV weight/bias
                    wo_ref,                       # per-head slab of W_o
                    bo_ref, ln1g_ref, ln1b_ref,
                    w1_ref, b1_ref, w2_ref, b2_ref,
                    ln2g_ref, ln2b_ref,
                    out_ref, score_ref,
                    x_bf_ref, acc_ref,
                    *, h, q_dim, v_dim, bt, s):
    """Grid = (batch_blocks, heads).  One step = one head of one batch block."""
    i = pl.program_id(1)          # head index (inner, "arbitrary" reduction axis)
    m_rows = bt * s

    @pl.when(i == 0)
    def _init():
        # Cast the residual block to bf16 once per batch block (reused by every
        # head; avoids h repeated casts) and zero the W_o accumulator.
        x_bf_ref[...] = x_ref[...].astype(jnp.bfloat16)
        acc_ref[...] = jnp.zeros_like(acc_ref)

    x_bf = x_bf_ref[...]

    # ---- fused per-head QKV projection: one (M, D) @ (D, 2q+v) MXU matmul ----
    qkv = (jnp.dot(x_bf, wqkv_ref[0], preferred_element_type=jnp.float32)
           + bqkv_ref[0])                                    # (M, 2q+v) f32

    # Fold 1/sqrt(q) into Q: S/q-times fewer VPU multiplies than scaling the
    # (S, S) score tensor; stored scores are numerically identical.
    q_i = qkv[:, :q_dim] * (1.0 / math.sqrt(q_dim))
    k_i = qkv[:, q_dim:2 * q_dim]
    v_i = qkv[:, 2 * q_dim:]

    # Leading-dim split only (minor dim untouched, S a multiple of 8):
    # (bt*S, d) -> (bt, S, d).  No per-(head,batch) stacking / relayout loop.
    Qb = q_i.reshape(bt, s, q_dim).astype(jnp.bfloat16)
    Kb = k_i.reshape(bt, s, q_dim).astype(jnp.bfloat16)
    Vb = v_i.reshape(bt, s, v_dim).astype(jnp.bfloat16)

    # ---- attention for this head: one batched score matmul + softmax + p@V ---
    scores = jnp.einsum('bik,bjk->bij', Qb, Kb,
                        preferred_element_type=jnp.float32)  # (bt, S, S)
    # Raw (pre-softmax) scores for this head, single store.  For realistic
    # S (a multiple of 128) this layout is already lane-dense.
    score_ref[0] = scores.astype(score_ref.dtype)

    m = jnp.max(scores, axis=-1, keepdims=True)
    e = jnp.exp(scores - m)
    p = e * pl.reciprocal(jnp.sum(e, axis=-1, keepdims=True), approx=True)

    attn = jnp.einsum('bij,bjv->biv', p.astype(jnp.bfloat16), Vb,
                      preferred_element_type=jnp.float32)    # (bt, S, v)

    # This head's contribution to the output projection, accumulated across the
    # head grid axis: (M, v) @ (v, D).  No head concatenation / relayout needed.
    attn2d = attn.reshape(m_rows, v_dim).astype(jnp.bfloat16)
    acc_ref[...] += jnp.dot(attn2d, wo_ref[0], preferred_element_type=jnp.float32)

    @pl.when(i == h - 1)
    def _finish():
        x = x_ref[...].astype(jnp.float32)
        mha = acc_ref[...] + bo_ref[...]
        # residual + LayerNorm 1 (dropout == identity in eval mode)
        y = _layer_norm(mha + x, ln1g_ref[...], ln1b_ref[...])
        # FeedForward: Linear -> ReLU -> Linear (bf16 MXU inputs, f32 accumulate)
        hdn = (jnp.dot(y.astype(jnp.bfloat16), w1_ref[...],
                       preferred_element_type=jnp.float32) + b1_ref[...])
        hdn = jnp.maximum(hdn, 0.0)
        ffn = (jnp.dot(hdn.astype(jnp.bfloat16), w2_ref[...],
                       preferred_element_type=jnp.float32) + b2_ref[...])
        # residual + LayerNorm 2
        out_ref[...] = _layer_norm(ffn + y, ln2g_ref[...],
                                   ln2b_ref[...]).astype(out_ref.dtype)


def encoder_forward(x, params, *, h, q_dim, v_dim, batch_tile=None):
    """x: (B, S, D) float32.  Returns (out (B, S, D), score (h*B, S, S))."""
    B, S, D = x.shape
    d_hidden = params["w1"].shape[1]
    qkv_w = 2 * q_dim + v_dim

    # --- batch_tile: target M = bt*S >= 256 (v6e/v7x MXU is 256-wide; v5e is
    # happy at 128), but keep >= 2 batch blocks so v7x's two TensorCores both
    # get work on the "parallel" axis; bt must divide B.
    if batch_tile is None:
        want = max(1, (256 + S - 1) // S)
        cap = max(1, B // 2)
        limit = max(1, min(want, cap))
        batch_tile = 1
        for c in range(1, B + 1):
            if B % c == 0 and c <= limit:
                batch_tile = c
    bt = batch_tile
    assert B % bt == 0, "batch_tile must divide the batch size"
    n_blocks = B // bt
    M = bt * S

    # --- host-side weight prep (head split done HERE, not inside the kernel) --
    # Per-head fused QKV slab: (h, D, 2q+v) in bf16 (halves weight DMA / VMEM;
    # f32 accumulation in-kernel).  Biases / LN params stay f32.
    wq3 = params["wq"].reshape(D, h, q_dim).transpose(1, 0, 2)
    wk3 = params["wk"].reshape(D, h, q_dim).transpose(1, 0, 2)
    wv3 = params["wv"].reshape(D, h, v_dim).transpose(1, 0, 2)
    wqkv = jnp.concatenate([wq3, wk3, wv3], axis=-1).astype(jnp.bfloat16)
    bq3 = params["bq"].reshape(h, 1, q_dim)
    bk3 = params["bk"].reshape(h, 1, q_dim)
    bv3 = params["bv"].reshape(h, 1, v_dim)
    bqkv = jnp.concatenate([bq3, bk3, bv3], axis=-1)            # (h, 1, 2q+v) f32
    wo3 = params["wo"].reshape(h, v_dim, D).astype(jnp.bfloat16)  # (h, v, D)
    w1 = params["w1"].astype(jnp.bfloat16)
    w2 = params["w2"].astype(jnp.bfloat16)

    x2d = x.reshape(B * S, D)                                    # fold B into M rows

    # --- explicit VMEM budget (scoped default is only 16/32 MiB) -------------
    est = 0
    est += (D * d_hidden + d_hidden * D) * 2                     # W1, W2 (bf16, 1-buffered)
    est += (d_hidden + 6 * D) * 4                                # small f32 params
    est += 2 * (D * qkv_w * 2 + qkv_w * 4 + v_dim * D * 2)       # per-head blocks (2-buf)
    est += 2 * (2 * M * D * 4 + bt * S * S * 4)                  # x / out / score blocks (2-buf)
    est += M * D * (2 + 4)                                       # scratch (x bf16, acc f32)
    est += (2 * M * qkv_w * 4 + 4 * bt * S * S * 4               # in-kernel temporaries
            + 6 * M * v_dim + 3 * M * D * 4 + 2 * M * d_hidden * 4)
    vmem_limit = min(max(int(est * 1.5), 32 * 1024 * 1024), 64 * 1024 * 1024)

    kernel = functools.partial(_encoder_kernel, h=h, q_dim=q_dim, v_dim=v_dim,
                               bt=bt, s=S)

    # Constant operands: single-buffered — their index map never changes, so
    # double-buffering them only wastes VMEM.
    def const_spec(shape):
        return pl.BlockSpec(shape, lambda b, i: (0,) * len(shape),
                            pipeline_mode=pl.Buffered(1))

    out2d, score4 = pl.pallas_call(
        kernel,
        out_shape=(
            jax.ShapeDtypeStruct((B * S, D), jnp.float32),
            jax.ShapeDtypeStruct((h * n_blocks, bt, S, S), jnp.float32),
        ),
        grid_spec=pltpu.PrefetchScalarGridSpec(
            num_scalar_prefetch=0,
            grid=(n_blocks, h),
            in_specs=[
                pl.BlockSpec((M, D), lambda b, i: (b, 0)),             # x (M-folded)
                pl.BlockSpec((1, D, qkv_w), lambda b, i: (i, 0, 0)),   # Wqkv[head]
                pl.BlockSpec((1, 1, qkv_w), lambda b, i: (i, 0, 0)),   # bqkv[head]
                pl.BlockSpec((1, v_dim, D), lambda b, i: (i, 0, 0)),   # Wo[head]
                const_spec((1, D)),                                    # bo
                const_spec((1, D)), const_spec((1, D)),                # ln1 g/b
                const_spec((D, d_hidden)), const_spec((1, d_hidden)),  # W1, b1
                const_spec((d_hidden, D)), const_spec((1, D)),         # W2, b2
                const_spec((1, D)), const_spec((1, D)),                # ln2 g/b
            ],
            out_specs=[
                pl.BlockSpec((M, D), lambda b, i: (b, 0)),
                pl.BlockSpec((1, bt, S, S),
                             lambda b, i: (i * n_blocks + b, 0, 0, 0)),
            ],
            scratch_shapes=[
                pltpu.VMEM((M, D), jnp.bfloat16),   # x cast once per batch block
                pltpu.VMEM((M, D), jnp.float32),    # W_o accumulator over heads
            ],
        ),
        compiler_params=pltpu.CompilerParams(
            dimension_semantics=("parallel", "arbitrary"),
            vmem_limit_bytes=vmem_limit,
        ),
    )(
        x2d, wqkv, bqkv, wo3,
        params["bo"], params["ln1_g"], params["ln1_b"],
        w1, params["b1"], w2, params["b2"],
        params["ln2_g"], params["ln2_b"],
    )

    out = out2d.reshape(B, S, D)
    # score4[i*n_blocks + b, bl] is head i of batch element b*bt + bl, so a
    # straight reshape reproduces PyTorch's (h*B, S, S) ordering
    # (score[i*B + b] = head i, batch b).
    score = score4.reshape(h * B, S, S)
    return out, score


def _reference(x, params, *, h, q_dim, v_dim):
    """Pure-JAX (f32) reference mirroring the PyTorch forward (eval mode)."""
    def ln(z, g, b, eps=1e-5):
        m = jnp.mean(z, -1, keepdims=True)
        v = jnp.mean((z - m) ** 2, -1, keepdims=True)
        return (z - m) / jnp.sqrt(v + eps) * g + b

    Q = x @ params["wq"] + params["bq"][0]
    K = x @ params["wk"] + params["bk"][0]
    V = x @ params["wv"] + params["bv"][0]

    def heads(t):
        return jnp.concatenate(jnp.split(t, h, axis=-1), axis=0)

    Qh, Kh, Vh = heads(Q), heads(K), heads(V)
    score = jnp.einsum("bsq,btq->bst", Qh, Kh) / math.sqrt(q_dim)
    p = jax.nn.softmax(score, axis=-1)
    attn = jnp.einsum("bst,btv->bsv", p, Vh)
    attn = jnp.concatenate(jnp.split(attn, h, axis=0), axis=-1)
    mha = attn @ params["wo"] + params["bo"][0]
    y = ln(mha + x, params["ln1_g"][0], params["ln1_b"][0])
    ffn = (jnp.maximum(y @ params["w1"] + params["b1"][0], 0.0)
           @ params["w2"] + params["b2"][0])
    out = ln(ffn + y, params["ln2_g"][0], params["ln2_b"][0])
    return out, score


if __name__ == "__main__":
    B, S, D = 2, 8, 32
    q_dim, v_dim, h = 8, 8, 4
    d_hidden = 64

    key = jax.random.PRNGKey(0)
    ks = jax.random.split(key, 16)
    scale = 0.1
    params = {
        "wq": scale * jax.random.normal(ks[0], (D, q_dim * h), jnp.float32),
        "bq": scale * jax.random.normal(ks[1], (1, q_dim * h), jnp.float32),
        "wk": scale * jax.random.normal(ks[2], (D, q_dim * h), jnp.float32),
        "bk": scale * jax.random.normal(ks[3], (1, q_dim * h), jnp.float32),
        "wv": scale * jax.random.normal(ks[4], (D, v_dim * h), jnp.float32),
        "bv": scale * jax.random.normal(ks[5], (1, v_dim * h), jnp.float32),
        "wo": scale * jax.random.normal(ks[6], (v_dim * h, D), jnp.float32),
        "bo": scale * jax.random.normal(ks[7], (1, D), jnp.float32),
        "ln1_g": jnp.ones((1, D), jnp.float32),
        "ln1_b": jnp.zeros((1, D), jnp.float32),
        "w1": scale * jax.random.normal(ks[8], (D, d_hidden), jnp.float32),
        "b1": scale * jax.random.normal(ks[9], (1, d_hidden), jnp.float32),
        "w2": scale * jax.random.normal(ks[10], (d_hidden, D), jnp.float32),
        "b2": scale * jax.random.normal(ks[11], (1, D), jnp.float32),
        "ln2_g": jnp.ones((1, D), jnp.float32),
        "ln2_b": jnp.zeros((1, D), jnp.float32),
    }

    x = jax.random.normal(ks[12], (B, S, D), jnp.float32)

    fwd = jax.jit(functools.partial(encoder_forward, h=h, q_dim=q_dim, v_dim=v_dim))
    out, score = fwd(x, params)
    jax.block_until_ready((out, score))

    ref_out, ref_score = _reference(x, params, h=h, q_dim=q_dim, v_dim=v_dim)
    assert out.shape == (B, S, D) and score.shape == (h * B, S, S)
    # bf16 matmuls inside the kernel => looser tolerance than a pure-f32 path.
    assert jnp.allclose(score, ref_score, atol=2e-2, rtol=2e-2), \
        float(jnp.max(jnp.abs(score - ref_score)))
    assert jnp.allclose(out, ref_out, atol=5e-2, rtol=5e-2), \
        float(jnp.max(jnp.abs(out - ref_out)))

    print("KERNEL_OK")
</pallas_src>

<mosaic_0001>
module attributes {stable_mosaic.version = 11 : i64} {
  func.func @_encoder_kernel(%arg0: i32, %arg1: i32, %arg2: memref<8x32xf32, #tpu.memory_space<vmem>>, %arg3: memref<1x32x24xbf16, #tpu.memory_space<vmem>>, %arg4: memref<1x1x24xf32, #tpu.memory_space<vmem>>, %arg5: memref<1x8x32xbf16, #tpu.memory_space<vmem>>, %arg6: memref<1x32xf32, #tpu.memory_space<vmem>>, %arg7: memref<1x32xf32, #tpu.memory_space<vmem>>, %arg8: memref<1x32xf32, #tpu.memory_space<vmem>>, %arg9: memref<32x64xbf16, #tpu.memory_space<vmem>>, %arg10: memref<1x64xf32, #tpu.memory_space<vmem>>, %arg11: memref<64x32xbf16, #tpu.memory_space<vmem>>, %arg12: memref<1x32xf32, #tpu.memory_space<vmem>>, %arg13: memref<1x32xf32, #tpu.memory_space<vmem>>, %arg14: memref<1x32xf32, #tpu.memory_space<vmem>>, %arg15: memref<8x32xf32, #tpu.memory_space<vmem>>, %arg16: memref<1x1x8x8xf32, #tpu.memory_space<vmem>>, %arg17: memref<8x32xbf16, #tpu.memory_space<vmem>>, %arg18: memref<8x32xf32, #tpu.memory_space<vmem>>) attributes {dimension_semantics = [#tpu.dimension_semantics<parallel>, #tpu.dimension_semantics<arbitrary>], iteration_bounds = array<i64: 2, 4>, scalar_prefetch = 0 : i64, scratch_operands = 2 : i64, tpu.core_type = #tpu.core_type<tc>, window_params = [{transform_indices = @transform_0, window_bounds = array<i64: 8, 32>}, {transform_indices = @transform_1, window_bounds = array<i64: 1, 32, 24>}, {transform_indices = @transform_2, window_bounds = array<i64: 1, 1, 24>}, {transform_indices = @transform_3, window_bounds = array<i64: 1, 8, 32>}, {pipeline_mode = #tpu.pipeline_mode<synchronous>, transform_indices = @transform_4, window_bounds = array<i64: 1, 32>}, {pipeline_mode = #tpu.pipeline_mode<synchronous>, transform_indices = @transform_5, window_bounds = array<i64: 1, 32>}, {pipeline_mode = #tpu.pipeline_mode<synchronous>, transform_indices = @transform_6, window_bounds = array<i64: 1, 32>}, {pipeline_mode = #tpu.pipeline_mode<synchronous>, transform_indices = @transform_7, window_bounds = array<i64: 32, 64>}, {pipeline_mode = #tpu.pipeline_mode<synchronous>, transform_indices = @transform_8, window_bounds = array<i64: 1, 64>}, {pipeline_mode = #tpu.pipeline_mode<synchronous>, transform_indices = @transform_9, window_bounds = array<i64: 64, 32>}, {pipeline_mode = #tpu.pipeline_mode<synchronous>, transform_indices = @transform_10, window_bounds = array<i64: 1, 32>}, {pipeline_mode = #tpu.pipeline_mode<synchronous>, transform_indices = @transform_11, window_bounds = array<i64: 1, 32>}, {pipeline_mode = #tpu.pipeline_mode<synchronous>, transform_indices = @transform_12, window_bounds = array<i64: 1, 32>}, {transform_indices = @transform_13, window_bounds = array<i64: 8, 32>}, {transform_indices = @transform_14, window_bounds = array<i64: 1, 1, 8, 8>}]} {
    %c0_i32 = arith.constant 0 : i32
    %0 = arith.cmpi eq, %arg1, %c0_i32 : i32
    %1 = arith.extui %0 : i1 to i32
    %c0_i32_0 = arith.constant 0 : i32
    %2 = arith.cmpi ne, %1, %c0_i32_0 : i32
    scf.if %2 {
      %c0_26 = arith.constant 0 : index
      %c0_27 = arith.constant 0 : index
      %49 = vector.load %arg2[%c0_26, %c0_27] : memref<8x32xf32, #tpu.memory_space<vmem>>, vector<8x32xf32>
      %50 = arith.truncf %49 : vector<8x32xf32> to vector<8x32xbf16>
      %c0_28 = arith.constant 0 : index
      %c0_29 = arith.constant 0 : index
      %51 = vector.load %arg17[%c0_28, %c0_29] : memref<8x32xbf16, #tpu.memory_space<vmem>>, vector<8x32xbf16>
      tpu.vector_store %arg17[%c0_28, %c0_29], %50 {strides = array<i32>} : memref<8x32xbf16, #tpu.memory_space<vmem>>, vector<8x32xbf16>,
      %cst_30 = arith.constant 0.000000e+00 : f32
      %52 = vector.broadcast %cst_30 : f32 to vector<8x32xf32>
      %c0_31 = arith.constant 0 : index
      %c0_32 = arith.constant 0 : index
      %53 = vector.load %arg18[%c0_31, %c0_32] : memref<8x32xf32, #tpu.memory_space<vmem>>, vector<8x32xf32>
      tpu.vector_store %arg18[%c0_31, %c0_32], %52 {strides = array<i32>} : memref<8x32xf32, #tpu.memory_space<vmem>>, vector<8x32xf32>,
    } else {
    }
    %c0 = arith.constant 0 : index
    %c0_1 = arith.constant 0 : index
    %3 = vector.load %arg17[%c0, %c0_1] : memref<8x32xbf16, #tpu.memory_space<vmem>>, vector<8x32xbf16>
    %c0_2 = arith.constant 0 : index
    %c0_3 = arith.constant 0 : index
    %c0_4 = arith.constant 0 : index
    %4 = vector.load %arg3[%c0_2, %c0_3, %c0_4] : memref<1x32x24xbf16, #tpu.memory_space<vmem>>, vector<1x32x24xbf16>
    %5 = vector.shape_cast %4 : vector<1x32x24xbf16> to vector<32x24xbf16>
    %cst = arith.constant dense<0.000000e+00> : vector<8x24xf32>
    %6 = tpu.matmul %3, %5, %cst {dimension_numbers = #tpu.dot_dimension_numbers<[1], [0], [0], [1], [0, 0, 1, 1], [], []>} : vector<8x32xbf16>, vector<32x24xbf16>, vector<8x24xf32> -> vector<8x24xf32>
    %c0_5 = arith.constant 0 : index
    %c0_6 = arith.constant 0 : index
    %c0_7 = arith.constant 0 : index
    %7 = vector.load %arg4[%c0_5, %c0_6, %c0_7] : memref<1x1x24xf32, #tpu.memory_space<vmem>>, vector<1x1x24xf32>
    %8 = vector.shape_cast %7 : vector<1x1x24xf32> to vector<1x24xf32>
    %9 = vector.broadcast %8 : vector<1x24xf32> to vector<8x24xf32>
    %10 = arith.addf %6, %9 : vector<8x24xf32>
    %11 = vector.extract_strided_slice %10 {offsets = [0, 0], sizes = [8, 8], strides = [1, 1]} : vector<8x24xf32> to vector<8x8xf32>
    %cst_8 = arith.constant 0.353553385 : f32
    %12 = vector.broadcast %cst_8 : f32 to vector<8x8xf32>
    %13 = arith.mulf %11, %12 : vector<8x8xf32>
    %14 = vector.extract_strided_slice %10 {offsets = [0, 8], sizes = [8, 8], strides = [1, 1]} : vector<8x24xf32> to vector<8x8xf32>
    %15 = vector.extract_strided_slice %10 {offsets = [0, 16], sizes = [8, 8], strides = [1, 1]} : vector<8x24xf32> to vector<8x8xf32>
    %16 = vector.shape_cast %13 : vector<8x8xf32> to vector<1x8x8xf32>
    %17 = arith.truncf %16 : vector<1x8x8xf32> to vector<1x8x8xbf16>
    %18 = vector.shape_cast %14 : vector<8x8xf32> to vector<1x8x8xf32>
    %19 = arith.truncf %18 : vector<1x8x8xf32> to vector<1x8x8xbf16>
    %20 = vector.shape_cast %15 : vector<8x8xf32> to vector<1x8x8xf32>
    %21 = arith.truncf %20 : vector<1x8x8xf32> to vector<1x8x8xbf16>
    "tpu.trace_start"() <{level = 10 : i32, message = "bik,bjk->bij"}> : () -> ()
    %cst_9 = arith.constant dense<0.000000e+00> : vector<1x8x8xf32>
    %22 = tpu.matmul %17, %19, %cst_9 {dimension_numbers = #tpu.dot_dimension_numbers<[2], [2], [1], [1], [0, 0, 0, 1, 1, 1], [0], [0]>} : vector<1x8x8xbf16>, vector<1x8x8xbf16>, vector<1x8x8xf32> -> vector<1x8x8xf32>
    "tpu.trace_stop"() : () -> ()
    %c0_10 = arith.constant 0 : index
    %c0_11 = arith.constant 0 : index
    %c0_12 = arith.constant 0 : index
    %c0_13 = arith.constant 0 : index
    %23 = vector.load %arg16[%c0_10, %c0_11, %c0_12, %c0_13] : memref<1x1x8x8xf32, #tpu.memory_space<vmem>>, vector<1x1x8x8xf32>
    %24 = vector.shape_cast %23 : vector<1x1x8x8xf32> to vector<1x8x8xf32>
    %25 = vector.shape_cast %22 : vector<1x8x8xf32> to vector<1x1x8x8xf32>
    tpu.vector_store %arg16[%c0_10, %c0_11, %c0_12, %c0_13], %25 {strides = array<i32>} : memref<1x1x8x8xf32, #tpu.memory_space<vmem>>, vector<1x1x8x8xf32>,
    %cst_14 = arith.constant dense<0xFF800000> : vector<1x8xf32>
    %26 = vector.multi_reduction <maximumf>, %22, %cst_14 [2] : vector<1x8x8xf32> to vector<1x8xf32>
    %27 = vector.shape_cast %26 : vector<1x8xf32> to vector<1x8x1xf32>
    %28 = vector.broadcast %27 : vector<1x8x1xf32> to vector<1x8x8xf32>
    %29 = arith.subf %22, %28 : vector<1x8x8xf32>
    %30 = math.exp %29 : vector<1x8x8xf32>
    %cst_15 = arith.constant dense<0.000000e+00> : vector<1x8xf32>
    %31 = vector.multi_reduction <add>, %30, %cst_15 [2] : vector<1x8x8xf32> to vector<1x8xf32>
    %32 = vector.shape_cast %31 : vector<1x8xf32> to vector<1x8x1xf32>
    %33 = tpu.reciprocal %32 {approx = true} : vector<1x8x1xf32> -> vector<1x8x1xf32>
    %34 = vector.broadcast %33 : vector<1x8x1xf32> to vector<1x8x8xf32>
    %35 = arith.mulf %30, %34 : vector<1x8x8xf32>
    %36 = arith.truncf %35 : vector<1x8x8xf32> to vector<1x8x8xbf16>
    "tpu.trace_start"() <{level = 10 : i32, message = "bij,bjv->biv"}> : () -> ()
    %cst_16 = arith.constant dense<0.000000e+00> : vector<1x8x8xf32>
    %37 = tpu.matmul %36, %21, %cst_16 {dimension_numbers = #tpu.dot_dimension_numbers<[2], [1], [1], [2], [0, 0, 0, 1, 1, 2], [0], [0]>} : vector<1x8x8xbf16>, vector<1x8x8xbf16>, vector<1x8x8xf32> -> vector<1x8x8xf32>
    "tpu.trace_stop"() : () -> ()
    %38 = vector.shape_cast %37 : vector<1x8x8xf32> to vector<8x8xf32>
    %39 = arith.truncf %38 : vector<8x8xf32> to vector<8x8xbf16>
    %c0_17 = arith.constant 0 : index
    %c0_18 = arith.constant 0 : index
    %40 = vector.load %arg18[%c0_17, %c0_18] : memref<8x32xf32, #tpu.memory_space<vmem>>, vector<8x32xf32>
    %c0_19 = arith.constant 0 : index
    %c0_20 = arith.constant 0 : index
    %c0_21 = arith.constant 0 : index
    %41 = vector.load %arg5[%c0_19, %c0_20, %c0_21] : memref<1x8x32xbf16, #tpu.memory_space<vmem>>, vector<1x8x32xbf16>
    %42 = vector.shape_cast %41 : vector<1x8x32xbf16> to vector<8x32xbf16>
    %cst_22 = arith.constant dense<0.000000e+00> : vector<8x32xf32>
    %43 = tpu.matmul %39, %42, %cst_22 {dimension_numbers = #tpu.dot_dimension_numbers<[1], [0], [0], [1], [0, 0, 1, 1], [], []>} : vector<8x8xbf16>, vector<8x32xbf16>, vector<8x32xf32> -> vector<8x32xf32>
    %44 = arith.addf %40, %43 : vector<8x32xf32>
    %c0_23 = arith.constant 0 : index
    %c0_24 = arith.constant 0 : index
    %45 = vector.load %arg18[%c0_23, %c0_24] : memref<8x32xf32, #tpu.memory_space<vmem>>, vector<8x32xf32>
    tpu.vector_store %arg18[%c0_23, %c0_24], %44 {strides = array<i32>} : memref<8x32xf32, #tpu.memory_space<vmem>>, vector<8x32xf32>,
    %c3_i32 = arith.constant 3 : i32
    %46 = arith.cmpi eq, %arg1, %c3_i32 : i32
    %47 = arith.extui %46 : i1 to i32
    %c0_i32_25 = arith.constant 0 : i32
    %48 = arith.cmpi ne, %47, %c0_i32_25 : i32
    scf.if %48 {
      %c0_26 = arith.constant 0 : index
      %c0_27 = arith.constant 0 : index
      %49 = vector.load %arg2[%c0_26, %c0_27] : memref<8x32xf32, #tpu.memory_space<vmem>>, vector<8x32xf32>
      %c0_28 = arith.constant 0 : index
      %c0_29 = arith.constant 0 : index
      %50 = vector.load %arg18[%c0_28, %c0_29] : memref<8x32xf32, #tpu.memory_space<vmem>>, vector<8x32xf32>
      %c0_30 = arith.constant 0 : index
      %c0_31 = arith.constant 0 : index
      %51 = vector.load %arg6[%c0_30, %c0_31] : memref<1x32xf32, #tpu.memory_space<vmem>>, vector<1x32xf32>
      %52 = vector.broadcast %51 : vector<1x32xf32> to vector<8x32xf32>
      %53 = arith.addf %50, %52 : vector<8x32xf32>
      %54 = arith.addf %53, %49 : vector<8x32xf32>
      %c0_32 = arith.constant 0 : index
      %c0_33 = arith.constant 0 : index
      %55 = vector.load %arg7[%c0_32, %c0_33] : memref<1x32xf32, #tpu.memory_space<vmem>>, vector<1x32xf32>
      %c0_34 = arith.constant 0 : index
      %c0_35 = arith.constant 0 : index
      %56 = vector.load %arg8[%c0_34, %c0_35] : memref<1x32xf32, #tpu.memory_space<vmem>>, vector<1x32xf32>
      %cst_36 = arith.constant dense<0.000000e+00> : vector<8xf32>
      %57 = vector.multi_reduction <add>, %54, %cst_36 [1] : vector<8x32xf32> to vector<8xf32>
      %58 = vector.shape_cast %57 : vector<8xf32> to vector<8x1xf32>
      %cst_37 = arith.constant 3.200000e+01 : f32
      %59 = vector.broadcast %cst_37 : f32 to vector<8x1xf32>
      %60 = arith.divf %58, %59 : vector<8x1xf32>
      %61 = vector.broadcast %60 : vector<8x1xf32> to vector<8x32xf32>
      %62 = arith.subf %54, %61 : vector<8x32xf32>
      %63 = arith.mulf %62, %62 : vector<8x32xf32>
      %cst_38 = arith.constant dense<0.000000e+00> : vector<8xf32>
      %64 = vector.multi_reduction <add>, %63, %cst_38 [1] : vector<8x32xf32> to vector<8xf32>
      %65 = vector.shape_cast %64 : vector<8xf32> to vector<8x1xf32>
      %cst_39 = arith.constant 3.200000e+01 : f32
      %66 = vector.broadcast %cst_39 : f32 to vector<8x1xf32>
      %67 = arith.divf %65, %66 : vector<8x1xf32>
      %68 = vector.broadcast %60 : vector<8x1xf32> to vector<8x32xf32>
      %69 = arith.subf %54, %68 : vector<8x32xf32>
      %cst_40 = arith.constant 9.99999974E-6 : f32
      %70 = vector.broadcast %cst_40 : f32 to vector<8x1xf32>
      %71 = arith.addf %67, %70 : vector<8x1xf32>
      %72 = math.rsqrt %71 : vector<8x1xf32>
      %73 = vector.broadcast %72 : vector<8x1xf32> to vector<8x32xf32>
      %74 = arith.mulf %69, %73 : vector<8x32xf32>
      %75 = vector.broadcast %55 : vector<1x32xf32> to vector<8x32xf32>
      %76 = arith.mulf %74, %75 : vector<8x32xf32>
      %77 = vector.broadcast %56 : vector<1x32xf32> to vector<8x32xf32>
      %78 = arith.addf %76, %77 : vector<8x32xf32>
      %79 = arith.truncf %78 : vector<8x32xf32> to vector<8x32xbf16>
      %c0_41 = arith.constant 0 : index
      %c0_42 = arith.constant 0 : index
      %80 = vector.load %arg9[%c0_41, %c0_42] : memref<32x64xbf16, #tpu.memory_space<vmem>>, vector<32x64xbf16>
      %cst_43 = arith.constant dense<0.000000e+00> : vector<8x64xf32>
      %81 = tpu.matmul %79, %80, %cst_43 {dimension_numbers = #tpu.dot_dimension_numbers<[1], [0], [0], [1], [0, 0, 1, 1], [], []>} : vector<8x32xbf16>, vector<32x64xbf16>, vector<8x64xf32> -> vector<8x64xf32>
      %c0_44 = arith.constant 0 : index
      %c0_45 = arith.constant 0 : index
      %82 = vector.load %arg10[%c0_44, %c0_45] : memref<1x64xf32, #tpu.memory_space<vmem>>, vector<1x64xf32>
      %83 = vector.broadcast %82 : vector<1x64xf32> to vector<8x64xf32>
      %84 = arith.addf %81, %83 : vector<8x64xf32>
      %cst_46 = arith.constant 0.000000e+00 : f32
      %85 = vector.broadcast %cst_46 : f32 to vector<8x64xf32>
      %86 = arith.maximumf %84, %85 : vector<8x64xf32>
      %87 = arith.truncf %86 : vector<8x64xf32> to vector<8x64xbf16>
      %c0_47 = arith.constant 0 : index
      %c0_48 = arith.constant 0 : index
      %88 = vector.load %arg11[%c0_47, %c0_48] : memref<64x32xbf16, #tpu.memory_space<vmem>>, vector<64x32xbf16>
      %cst_49 = arith.constant dense<0.000000e+00> : vector<8x32xf32>
      %89 = tpu.matmul %87, %88, %cst_49 {dimension_numbers = #tpu.dot_dimension_numbers<[1], [0], [0], [1], [0, 0, 1, 1], [], []>} : vector<8x64xbf16>, vector<64x32xbf16>, vector<8x32xf32> -> vector<8x32xf32>
      %c0_50 = arith.constant 0 : index
      %c0_51 = arith.constant 0 : index
      %90 = vector.load %arg12[%c0_50, %c0_51] : memref<1x32xf32, #tpu.memory_space<vmem>>, vector<1x32xf32>
      %91 = vector.broadcast %90 : vector<1x32xf32> to vector<8x32xf32>
      %92 = arith.addf %89, %91 : vector<8x32xf32>
      %93 = arith.addf %92, %78 : vector<8x32xf32>
      %c0_52 = arith.constant 0 : index
      %c0_53 = arith.constant 0 : index
      %94 = vector.load %arg13[%c0_52, %c0_53] : memref<1x32xf32, #tpu.memory_space<vmem>>, vector<1x32xf32>
      %c0_54 = arith.constant 0 : index
      %c0_55 = arith.constant 0 : index
      %95 = vector.load %arg14[%c0_54, %c0_55] : memref<1x32xf32, #tpu.memory_space<vmem>>, vector<1x32xf32>
      %cst_56 = arith.constant dense<0.000000e+00> : vector<8xf32>
      %96 = vector.multi_reduction <add>, %93, %cst_56 [1] : vector<8x32xf32> to vector<8xf32>
      %97 = vector.shape_cast %96 : vector<8xf32> to vector<8x1xf32>
      %cst_57 = arith.constant 3.200000e+01 : f32
      %98 = vector.broadcast %cst_57 : f32 to vector<8x1xf32>
      %99 = arith.divf %97, %98 : vector<8x1xf32>
      %100 = vector.broadcast %99 : vector<8x1xf32> to vector<8x32xf32>
      %101 = arith.subf %93, %100 : vector<8x32xf32>
      %102 = arith.mulf %101, %101 : vector<8x32xf32>
      %cst_58 = arith.constant dense<0.000000e+00> : vector<8xf32>
      %103 = vector.multi_reduction <add>, %102, %cst_58 [1] : vector<8x32xf32> to vector<8xf32>
      %104 = vector.shape_cast %103 : vector<8xf32> to vector<8x1xf32>
      %cst_59 = arith.constant 3.200000e+01 : f32
      %105 = vector.broadcast %cst_59 : f32 to vector<8x1xf32>
      %106 = arith.divf %104, %105 : vector<8x1xf32>
      %107 = vector.broadcast %99 : vector<8x1xf32> to vector<8x32xf32>
      %108 = arith.subf %93, %107 : vector<8x32xf32>
      %cst_60 = arith.constant 9.99999974E-6 : f32
      %109 = vector.broadcast %cst_60 : f32 to vector<8x1xf32>
      %110 = arith.addf %106, %109 : vector<8x1xf32>
      %111 = math.rsqrt %110 : vector<8x1xf32>
      %112 = vector.broadcast %111 : vector<8x1xf32> to vector<8x32xf32>
      %113 = arith.mulf %108, %112 : vector<8x32xf32>
      %114 = vector.broadcast %94 : vector<1x32xf32> to vector<8x32xf32>
      %115 = arith.mulf %113, %114 : vector<8x32xf32>
      %116 = vector.broadcast %95 : vector<1x32xf32> to vector<8x32xf32>
      %117 = arith.addf %115, %116 : vector<8x32xf32>
      %c0_61 = arith.constant 0 : index
      %c0_62 = arith.constant 0 : index
      %118 = vector.load %arg15[%c0_61, %c0_62] : memref<8x32xf32, #tpu.memory_space<vmem>>, vector<8x32xf32>
      tpu.vector_store %arg15[%c0_61, %c0_62], %117 {strides = array<i32>} : memref<8x32xf32, #tpu.memory_space<vmem>>, vector<8x32xf32>,
    } else {
    }
    return
  }
  func.func @transform_0(%arg0: i32, %arg1: i32) -> (i32, i32) {
    %c0_i32 = arith.constant 0 : i32
    %c0_i32_0 = arith.constant 0 : i32
    return %arg0, %c0_i32 : i32, i32
  }
  func.func @transform_1(%arg0: i32, %arg1: i32) -> (i32, i32, i32) {
    %c0_i32 = arith.constant 0 : i32
    %c0_i32_0 = arith.constant 0 : i32
    %c0_i32_1 = arith.constant 0 : i32
    return %arg1, %c0_i32, %c0_i32_0 : i32, i32, i32
  }
  func.func @transform_2(%arg0: i32, %arg1: i32) -> (i32, i32, i32) {
    %c0_i32 = arith.constant 0 : i32
    %c0_i32_0 = arith.constant 0 : i32
    %c0_i32_1 = arith.constant 0 : i32
    return %arg1, %c0_i32, %c0_i32_0 : i32, i32, i32
  }
  func.func @transform_3(%arg0: i32, %arg1: i32) -> (i32, i32, i32) {
    %c0_i32 = arith.constant 0 : i32
    %c0_i32_0 = arith.constant 0 : i32
    %c0_i32_1 = arith.constant 0 : i32
    return %arg1, %c0_i32, %c0_i32_0 : i32, i32, i32
  }
  func.func @transform_4(%arg0: i32, %arg1: i32) -> (i32, i32) {
    %c0_i32 = arith.constant 0 : i32
    %c0_i32_0 = arith.constant 0 : i32
    %c0_i32_1 = arith.constant 0 : i32
    return %c0_i32, %c0_i32_0 : i32, i32
  }
  func.func @transform_5(%arg0: i32, %arg1: i32) -> (i32, i32) {
    %c0_i32 = arith.constant 0 : i32
    %c0_i32_0 = arith.constant 0 : i32
    %c0_i32_1 = arith.constant 0 : i32
    return %c0_i32, %c0_i32_0 : i32, i32
  }
  func.func @transform_6(%arg0: i32, %arg1: i32) -> (i32, i32) {
    %c0_i32 = arith.constant 0 : i32
    %c0_i32_0 = arith.constant 0 : i32
    %c0_i32_1 = arith.constant 0 : i32
    return %c0_i32, %c0_i32_0 : i32, i32
  }
  func.func @transform_7(%arg0: i32, %arg1: i32) -> (i32, i32) {
    %c0_i32 = arith.constant 0 : i32
    %c0_i32_0 = arith.constant 0 : i32
    %c0_i32_1 = arith.constant 0 : i32
    return %c0_i32, %c0_i32_0 : i32, i32
  }
  func.func @transform_8(%arg0: i32, %arg1: i32) -> (i32, i32) {
    %c0_i32 = arith.constant 0 : i32
    %c0_i32_0 = arith.constant 0 : i32
    %c0_i32_1 = arith.constant 0 : i32
    return %c0_i32, %c0_i32_0 : i32, i32
  }
  func.func @transform_9(%arg0: i32, %arg1: i32) -> (i32, i32) {
    %c0_i32 = arith.constant 0 : i32
    %c0_i32_0 = arith.constant 0 : i32
    %c0_i32_1 = arith.constant 0 : i32
    return %c0_i32, %c0_i32_0 : i32, i32
  }
  func.func @transform_10(%arg0: i32, %arg1: i32) -> (i32, i32) {
    %c0_i32 = arith.constant 0 : i32
    %c0_i32_0 = arith.constant 0 : i32
    %c0_i32_1 = arith.constant 0 : i32
    return %c0_i32, %c0_i32_0 : i32, i32
  }
  func.func @transform_11(%arg0: i32, %arg1: i32) -> (i32, i32) {
    %c0_i32 = arith.constant 0 : i32
    %c0_i32_0 = arith.constant 0 : i32
    %c0_i32_1 = arith.constant 0 : i32
    return %c0_i32, %c0_i32_0 : i32, i32
  }
  func.func @transform_12(%arg0: i32, %arg1: i32) -> (i32, i32) {
    %c0_i32 = arith.constant 0 : i32
    %c0_i32_0 = arith.constant 0 : i32
    %c0_i32_1 = arith.constant 0 : i32
    return %c0_i32, %c0_i32_0 : i32, i32
  }
  func.func @transform_13(%arg0: i32, %arg1: i32) -> (i32, i32) {
    %c0_i32 = arith.constant 0 : i32
    %c0_i32_0 = arith.constant 0 : i32
    return %arg0, %c0_i32 : i32, i32
  }
  func.func @transform_14(%arg0: i32, %arg1: i32) -> (i32, i32, i32, i32) {
    %c2_i32 = arith.constant 2 : i32
    %0 = arith.muli %arg1, %c2_i32 : i32
    %1 = arith.addi %0, %arg0 : i32
    %c0_i32 = arith.constant 0 : i32
    %c0_i32_0 = arith.constant 0 : i32
    %c0_i32_1 = arith.constant 0 : i32
    %c0_i32_2 = arith.constant 0 : i32
    return %1, %c0_i32, %c0_i32_0, %c0_i32_1 : i32, i32, i32, i32
  }
}

</mosaic_0001>

<llo_original>
// kernel: encoder_forward.1
$region0: #{encoder_forward.1}
  #allocation0 [shape = 'u32[]', space=smem, size = 0x4, offset = 0x4, fixed_abs, tag = 'smem constant byte address 0x4 - core index']
  #allocation1 [shape = 'u32[144,128]{1,0:T(1,128)}', space=vmem, size = 0x12000, scoped, tag = 'internal scratch']
  #allocation2 [shape = 'bf16[8,32]{1,0:T(8,128)(2,1)}', space=vmem, size = 0x800, scoped, tag = 'scratch operand']
  #allocation3 [shape = 'f32[8,32]{1,0:T(8,128)}', space=vmem, size = 0x1000, scoped, tag = 'scratch operand']
  %s0 = inlined_call_operand.vmem [shape: f32[16,32], index: 0, kind: input, shape index: {}]
  %s1 = inlined_call_operand.vmem [shape: bf16[4,32,24], index: 1, kind: input, shape index: {}]
  %s2 = inlined_call_operand.vmem [shape: f32[4,1,24], index: 2, kind: input, shape index: {}]
  %s3 = inlined_call_operand.vmem [shape: bf16[4,8,32], index: 3, kind: input, shape index: {}]
  %s4 = inlined_call_operand.vmem [shape: f32[1,32], index: 4, kind: input, shape index: {}]
  %s5 = inlined_call_operand.vmem [shape: f32[1,32], index: 5, kind: input, shape index: {}]
  %s6 = inlined_call_operand.vmem [shape: f32[1,32], index: 6, kind: input, shape index: {}]
  %s7 = inlined_call_operand.vmem [shape: bf16[32,64], index: 7, kind: input, shape index: {}]
  %s8 = inlined_call_operand.vmem [shape: f32[1,64], index: 8, kind: input, shape index: {}]
  %s9 = inlined_call_operand.vmem [shape: bf16[64,32], index: 9, kind: input, shape index: {}]
  %s10 = inlined_call_operand.vmem [shape: f32[1,32], index: 10, kind: input, shape index: {}]
  %s11 = inlined_call_operand.vmem [shape: f32[1,32], index: 11, kind: input, shape index: {}]
  %s12 = inlined_call_operand.vmem [shape: f32[1,32], index: 12, kind: input, shape index: {}]
  %s13 = inlined_call_operand.hbm [shape: f32[16,32], index: 13, kind: output, shape index: {0}]
  %s14 = inlined_call_operand.hbm [shape: f32[8,1,8,8], index: 14, kind: output, shape index: {1}]
  %15 = xla_tuple %s13, %s14
  %s16 = sld [smem:[#allocation0]]
  $region101: #{encoder_forward.1} parent=0
    _
  %s18 = ssub.s32 1, %s16
  %s19 = scalar_select 0, %s18, %s16
  $region1: #{encoder_forward.1} parent=0
    #allocation4 [shape = 'u8[8192]{0}', space=vmem, size = 0x2000, scoped, tag = 'output window, operand 0']
    #allocation5 [shape = 's32[2]{0}', space=sflag, size = 0x8, scoped, tag = 'scoped memory for encoder_forward.1']
    #allocation6 [shape = 'u8[8192]{0}', space=vmem, size = 0x2000, scoped, tag = 'output window, operand 1']
    #allocation7 [shape = 's32[2]{0}', space=sflag, size = 0x8, scoped, tag = 'scoped memory for encoder_forward.1']
    %20 = vsyncpa [#allocation5], 0
    %s21 = scalar_lea.sflag [#allocation5], 1
    %22 = vsyncpa %s21, 0
    %23 = vsyncpa [#allocation7], 0
    %s24 = scalar_lea.sflag [#allocation7], 1
    %25 = vsyncpa %s24, 0
    loop: start=0, step=1, limit=10
    $region2: #{encoder_forward.1} parent=1 // loop_pre_header
      _
    $region3: #{encoder_forward.1} parent=1 // loop_header
      %s27 = sphi 0, %s31
      %p28 = scmp.ge.s32.totalorder %s27, 10
      %s34 = sphi 0, %s46
      %s35 = sphi 0, %s42
      %s36 = sphi 0, %s34
      %s37 = sphi 0, %s35
      %s38 = sphi 0, %s36
      %s39 = sphi 0, %s37
      %s49 = sphi 0, %s51
      %s52 = sphi 0, %s49
      %s53 = sphi 0, %s52
      %s69 = sphi 0, %s53
      %s75 = sphi 0, %s77
      %s78 = sphi 0, %s75
      %s79 = sphi 0, %s78
      %s95 = sphi 0, %s79
      %s101 = sphi 0, %s103
      %s104 = sphi 0, %s101
      %s105 = sphi 0, %s104
      %s121 = sphi 0, %s105
      %s127 = sphi 0, %s129
      %s130 = sphi 0, %s127
      %s131 = sphi 0, %s130
      %s147 = sphi 0, %s131
      %s151 = sphi 0, %s151
      %s153 = sphi 0, %s151
      %s154 = sphi 0, %s153
      %s168 = sphi 0, %s154
      %s172 = sphi 0, %s172
      %s174 = sphi 0, %s172
      %s175 = sphi 0, %s174
      %s189 = sphi 0, %s175
      %s193 = sphi 0, %s193
      %s195 = sphi 0, %s193
      %s196 = sphi 0, %s195
      %s210 = sphi 0, %s196
      %s214 = sphi 0, %s214
      %s216 = sphi 0, %s214
      %s217 = sphi 0, %s216
      %s231 = sphi 0, %s217
      %s235 = sphi 0, %s235
      %s237 = sphi 0, %s235
      %s238 = sphi 0, %s237
      %s252 = sphi 0, %s238
      %s256 = sphi 0, %s256
      %s258 = sphi 0, %s256
      %s259 = sphi 0, %s258
      %s273 = sphi 0, %s259
      %s277 = sphi 0, %s277
      %s279 = sphi 0, %s277
      %s280 = sphi 0, %s279
      %s294 = sphi 0, %s280
      %s298 = sphi 0, %s298
      %s300 = sphi 0, %s298
      %s301 = sphi 0, %s300
      %s315 = sphi 0, %s301
      %s319 = sphi 0, %s319
      %s321 = sphi 0, %s319
      %s322 = sphi 0, %s321
      %s336 = sphi 0, %s322
      %s342 = sphi 0, %s344
      %s345 = sphi 0, %s342
      %s346 = sphi 0, %s345
      %s362 = sphi 0, %s346
      %s372 = sphi 0, %s374
      %s375 = sphi 0, %s372
      %s376 = sphi 0, %s375
      %s392 = sphi 0, %s376
    $region4: #{encoder_forward.1} parent=1 // loop_header_branch
      %30 = sbr.rel (%p28) target = $region8
    $region5: #{encoder_forward.1} parent=1 // loop_body
      %s32 = ssub.s32 %s27, 1
      %s33 = ssub.s32 %s27, 2
      %s40 = sadd.s32 1, %s35
      %p41 = scmp.ge.s32.totalorder %s40, 4
      %s42 = scalar_select %p41, 0, %s40
      %s43 = sadd.s32 1, %s34
      %s44 = scalar_select %p41, %s43, %s34
      %p45 = scmp.ge.s32.totalorder %s44, 2
      %s46 = scalar_select %p45, 0, %s44
      %s47 = ssub.s32 %s34, %s46
      %p48 = scmp.eq.s32.totalorder %s47, 0
      %s50 = sadd.s32 %s49, 1
      %s51 = scalar_select %p48, %s49, %s50
      %p54 = pneg %p48
      %p55 = scmp.eq.s32.totalorder %s27, 7
      %p56 = por %p54, %p55
      %p57 = scmp.ne.s32.totalorder %s49, %s52
      %p58 = scmp.eq.s32.totalorder %s27, 0
      %p59 = por %p57, %p58
      %p60 = scmp.ne.s32.totalorder %s49, %s52
      %p61 = scmp.eq.s32.totalorder %s32, 7
      %p62 = por %p60, %p61
      %p63 = scmp.ne.s32.totalorder %s52, %s53
      %p64 = scmp.eq.s32.totalorder %s32, 0
      %p65 = por %p63, %p64
      %p66 = scmp.ne.s32.totalorder %s52, %s53
      %p67 = scmp.eq.s32.totalorder %s33, 7
      %p68 = por %p66, %p67
      %p70 = scmp.ne.s32.totalorder %s53, %s69
      %p71 = scmp.eq.s32.totalorder %s33, 0
      %p72 = por %p70, %p71
      %s73 = ssub.s32 %s35, %s42
      %p74 = scmp.eq.s32.totalorder %s73, 0
      %s76 = sadd.s32 %s75, 1
      %s77 = scalar_select %p74, %s75, %s76
      %p80 = pneg %p74
      %p81 = scmp.eq.s32.totalorder %s27, 7
      %p82 = por %p80, %p81
      %p83 = scmp.ne.s32.totalorder %s75, %s78
      %p84 = scmp.eq.s32.totalorder %s27, 0
      %p85 = por %p83, %p84
      %p86 = scmp.ne.s32.totalorder %s75, %s78
      %p87 = scmp.eq.s32.totalorder %s32, 7
      %p88 = por %p86, %p87
      %p89 = scmp.ne.s32.totalorder %s78, %s79
      %p90 = scmp.eq.s32.totalorder %s32, 0
      %p91 = por %p89, %p90
      %p92 = scmp.ne.s32.totalorder %s78, %s79
      %p93 = scmp.eq.s32.totalorder %s33, 7
      %p94 = por %p92, %p93
      %p96 = scmp.ne.s32.totalorder %s79, %s95
      %p97 = scmp.eq.s32.totalorder %s33, 0
      %p98 = por %p96, %p97
      %s99 = ssub.s32 %s35, %s42
      %p100 = scmp.eq.s32.totalorder %s99, 0
      %s102 = sadd.s32 %s101, 1
      %s103 = scalar_select %p100, %s101, %s102
      %p106 = pneg %p100
      %p107 = scmp.eq.s32.totalorder %s27, 7
      %p108 = por %p106, %p107
      %p109 = scmp.ne.s32.totalorder %s101, %s104
      %p110 = scmp.eq.s32.totalorder %s27, 0
      %p111 = por %p109, %p110
      %p112 = scmp.ne.s32.totalorder %s101, %s104
      %p113 = scmp.eq.s32.totalorder %s32, 7
      %p114 = por %p112, %p113
      %p115 = scmp.ne.s32.totalorder %s104, %s105
      %p116 = scmp.eq.s32.totalorder %s32, 0
      %p117 = por %p115, %p116
      %p118 = scmp.ne.s32.totalorder %s104, %s105
      %p119 = scmp.eq.s32.totalorder %s33, 7
      %p120 = por %p118, %p119
      %p122 = scmp.ne.s32.totalorder %s105, %s121
      %p123 = scmp.eq.s32.totalorder %s33, 0
      %p124 = por %p122, %p123
      %s125 = ssub.s32 %s35, %s42
      %p126 = scmp.eq.s32.totalorder %s125, 0
      %s128 = sadd.s32 %s127, 1
      %s129 = scalar_select %p126, %s127, %s128
      %p132 = pneg %p126
      %p133 = scmp.eq.s32.totalorder %s27, 7
      %p134 = por %p132, %p133
      %p135 = scmp.ne.s32.totalorder %s127, %s130
      %p136 = scmp.eq.s32.totalorder %s27, 0
      %p137 = por %p135, %p136
      %p138 = scmp.ne.s32.totalorder %s127, %s130
      %p139 = scmp.eq.s32.totalorder %s32, 7
      %p140 = por %p138, %p139
      %p141 = scmp.ne.s32.totalorder %s130, %s131
      %p142 = scmp.eq.s32.totalorder %s32, 0
      %p143 = por %p141, %p142
      %p144 = scmp.ne.s32.totalorder %s130, %s131
      %p145 = scmp.eq.s32.totalorder %s33, 7
      %p146 = por %p144, %p145
      %p148 = scmp.ne.s32.totalorder %s131, %s147
      %p149 = scmp.eq.s32.totalorder %s33, 0
      %p150 = por %p148, %p149
      %s152 = sadd.s32 %s151, 1
      %p155 = scmp.eq.s32.totalorder %s27, 7
      %p156 = scmp.ne.s32.totalorder %s151, %s153
      %p157 = scmp.eq.s32.totalorder %s27, 0
      %p158 = por %p156, %p157
      %p159 = scmp.ne.s32.totalorder %s151, %s153
      %p160 = scmp.eq.s32.totalorder %s32, 7
      %p161 = por %p159, %p160
      %p162 = scmp.ne.s32.totalorder %s153, %s154
      %p163 = scmp.eq.s32.totalorder %s32, 0
      %p164 = por %p162, %p163
      %p165 = scmp.ne.s32.totalorder %s153, %s154
      %p166 = scmp.eq.s32.totalorder %s33, 7
      %p167 = por %p165, %p166
      %p169 = scmp.ne.s32.totalorder %s154, %s168
      %p170 = scmp.eq.s32.totalorder %s33, 0
      %p171 = por %p169, %p170
      %s173 = sadd.s32 %s172, 1
      %p176 = scmp.eq.s32.totalorder %s27, 7
      %p177 = scmp.ne.s32.totalorder %s172, %s174
      %p178 = scmp.eq.s32.totalorder %s27, 0
      %p179 = por %p177, %p178
      %p180 = scmp.ne.s32.totalorder %s172, %s174
      %p181 = scmp.eq.s32.totalorder %s32, 7
      %p182 = por %p180, %p181
      %p183 = scmp.ne.s32.totalorder %s174, %s175
      %p184 = scmp.eq.s32.totalorder %s32, 0
      %p185 = por %p183, %p184
      %p186 = scmp.ne.s32.totalorder %s174, %s175
      %p187 = scmp.eq.s32.totalorder %s33, 7
      %p188 = por %p186, %p187
      %p190 = scmp.ne.s32.totalorder %s175, %s189
      %p191 = scmp.eq.s32.totalorder %s33, 0
      %p192 = por %p190, %p191
      %s194 = sadd.s32 %s193, 1
      %p197 = scmp.eq.s32.totalorder %s27, 7
      %p198 = scmp.ne.s32.totalorder %s193, %s195
      %p199 = scmp.eq.s32.totalorder %s27, 0
      %p200 = por %p198, %p199
      %p201 = scmp.ne.s32.totalorder %s193, %s195
      %p202 = scmp.eq.s32.totalorder %s32, 7
      %p203 = por %p201, %p202
      %p204 = scmp.ne.s32.totalorder %s195, %s196
      %p205 = scmp.eq.s32.totalorder %s32, 0
      %p206 = por %p204, %p205
      %p207 = scmp.ne.s32.totalorder %s195, %s196
      %p208 = scmp.eq.s32.totalorder %s33, 7
      %p209 = por %p207, %p208
      %p211 = scmp.ne.s32.totalorder %s196, %s210
      %p212 = scmp.eq.s32.totalorder %s33, 0
      %p213 = por %p211, %p212
      %s215 = sadd.s32 %s214, 1
      %p218 = scmp.eq.s32.totalorder %s27, 7
      %p219 = scmp.ne.s32.totalorder %s214, %s216
      %p220 = scmp.eq.s32.totalorder %s27, 0
      %p221 = por %p219, %p220
      %p222 = scmp.ne.s32.totalorder %s214, %s216
      %p223 = scmp.eq.s32.totalorder %s32, 7
      %p224 = por %p222, %p223
      %p225 = scmp.ne.s32.totalorder %s216, %s217
      %p226 = scmp.eq.s32.totalorder %s32, 0
      %p227 = por %p225, %p226
      %p228 = scmp.ne.s32.totalorder %s216, %s217
      %p229 = scmp.eq.s32.totalorder %s33, 7
      %p230 = por %p228, %p229
      %p232 = scmp.ne.s32.totalorder %s217, %s231
      %p233 = scmp.eq.s32.totalorder %s33, 0
      %p234 = por %p232, %p233
      %s236 = sadd.s32 %s235, 1
      %p239 = scmp.eq.s32.totalorder %s27, 7
      %p240 = scmp.ne.s32.totalorder %s235, %s237
      %p241 = scmp.eq.s32.totalorder %s27, 0
      %p242 = por %p240, %p241
      %p243 = scmp.ne.s32.totalorder %s235, %s237
      %p244 = scmp.eq.s32.totalorder %s32, 7
      %p245 = por %p243, %p244
      %p246 = scmp.ne.s32.totalorder %s237, %s238
      %p247 = scmp.eq.s32.totalorder %s32, 0
      %p248 = por %p246, %p247
      %p249 = scmp.ne.s32.totalorder %s237, %s238
      %p250 = scmp.eq.s32.totalorder %s33, 7
      %p251 = por %p249, %p250
      %p253 = scmp.ne.s32.totalorder %s238, %s252
      %p254 = scmp.eq.s32.totalorder %s33, 0
      %p255 = por %p253, %p254
      %s257 = sadd.s32 %s256, 1
      %p260 = scmp.eq.s32.totalorder %s27, 7
      %p261 = scmp.ne.s32.totalorder %s256, %s258
      %p262 = scmp.eq.s32.totalorder %s27, 0
      %p263 = por %p261, %p262
      %p264 = scmp.ne.s32.totalorder %s256, %s258
      %p265 = scmp.eq.s32.totalorder %s32, 7
      %p266 = por %p264, %p265
      %p267 = scmp.ne.s32.totalorder %s258, %s259
      %p268 = scmp.eq.s32.totalorder %s32, 0
      %p269 = por %p267, %p268
      %p270 = scmp.ne.s32.totalorder %s258, %s259
      %p271 = scmp.eq.s32.totalorder %s33, 7
      %p272 = por %p270, %p271
      %p274 = scmp.ne.s32.totalorder %s259, %s273
      %p275 = scmp.eq.s32.totalorder %s33, 0
      %p276 = por %p274, %p275
      %s278 = sadd.s32 %s277, 1
      %p281 = scmp.eq.s32.totalorder %s27, 7
      %p282 = scmp.ne.s32.totalorder %s277, %s279
      %p283 = scmp.eq.s32.totalorder %s27, 0
      %p284 = por %p282, %p283
      %p285 = scmp.ne.s32.totalorder %s277, %s279
      %p286 = scmp.eq.s32.totalorder %s32, 7
      %p287 = por %p285, %p286
      %p288 = scmp.ne.s32.totalorder %s279, %s280
      %p289 = scmp.eq.s32.totalorder %s32, 0
      %p290 = por %p288, %p289
      %p291 = scmp.ne.s32.totalorder %s279, %s280
      %p292 = scmp.eq.s32.totalorder %s33, 7
      %p293 = por %p291, %p292
      %p295 = scmp.ne.s32.totalorder %s280, %s294
      %p296 = scmp.eq.s32.totalorder %s33, 0
      %p297 = por %p295, %p296
      %s299 = sadd.s32 %s298, 1
      %p302 = scmp.eq.s32.totalorder %s27, 7
      %p303 = scmp.ne.s32.totalorder %s298, %s300
      %p304 = scmp.eq.s32.totalorder %s27, 0
      %p305 = por %p303, %p304
      %p306 = scmp.ne.s32.totalorder %s298, %s300
      %p307 = scmp.eq.s32.totalorder %s32, 7
      %p308 = por %p306, %p307
      %p309 = scmp.ne.s32.totalorder %s300, %s301
      %p310 = scmp.eq.s32.totalorder %s32, 0
      %p311 = por %p309, %p310
      %p312 = scmp.ne.s32.totalorder %s300, %s301
      %p313 = scmp.eq.s32.totalorder %s33, 7
      %p314 = por %p312, %p313
      %p316 = scmp.ne.s32.totalorder %s301, %s315
      %p317 = scmp.eq.s32.totalorder %s33, 0
      %p318 = por %p316, %p317
      %s320 = sadd.s32 %s319, 1
      %p323 = scmp.eq.s32.totalorder %s27, 7
      %p324 = scmp.ne.s32.totalorder %s319, %s321
      %p325 = scmp.eq.s32.totalorder %s27, 0
      %p326 = por %p324, %p325
      %p327 = scmp.ne.s32.totalorder %s319, %s321
      %p328 = scmp.eq.s32.totalorder %s32, 7
      %p329 = por %p327, %p328
      %p330 = scmp.ne.s32.totalorder %s321, %s322
      %p331 = scmp.eq.s32.totalorder %s32, 0
      %p332 = por %p330, %p331
      %p333 = scmp.ne.s32.totalorder %s321, %s322
      %p334 = scmp.eq.s32.totalorder %s33, 7
      %p335 = por %p333, %p334
      %p337 = scmp.ne.s32.totalorder %s322, %s336
      %p338 = scmp.eq.s32.totalorder %s33, 0
      %p339 = por %p337, %p338
      %s340 = ssub.s32 %s34, %s46
      %p341 = scmp.eq.s32.totalorder %s340, 0
      %s343 = sadd.s32 %s342, 1
      %s344 = scalar_select %p341, %s342, %s343
      %p347 = pneg %p341
      %p348 = scmp.eq.s32.totalorder %s27, 7
      %p349 = por %p347, %p348
      %p350 = scmp.ne.s32.totalorder %s342, %s345
      %p351 = scmp.eq.s32.totalorder %s27, 0
      %p352 = por %p350, %p351
      %p353 = scmp.ne.s32.totalorder %s342, %s345
      %p354 = scmp.eq.s32.totalorder %s32, 7
      %p355 = por %p353, %p354
      %p356 = scmp.ne.s32.totalorder %s345, %s346
      %p357 = scmp.eq.s32.totalorder %s32, 0
      %p358 = por %p356, %p357
      %p359 = scmp.ne.s32.totalorder %s345, %s346
      %p360 = scmp.eq.s32.totalorder %s33, 7
      %p361 = por %p359, %p360
      %p363 = scmp.ne.s32.totalorder %s346, %s362
      %p364 = scmp.eq.s32.totalorder %s33, 0
      %p365 = por %p363, %p364
      %s366 = smul.u32 %s35, 2
      %s367 = sadd.s32 %s366, %s34
      %s368 = smul.u32 %s42, 2
      %s369 = sadd.s32 %s368, %s46
      %s370 = ssub.s32 %s367, %s369
      %p371 = scmp.eq.s32.totalorder %s370, 0
      %s373 = sadd.s32 %s372, 1
      %s374 = scalar_select %p371, %s372, %s373
      %p377 = pneg %p371
      %p378 = scmp.eq.s32.totalorder %s27, 7
      %p379 = por %p377, %p378
      %p380 = scmp.ne.s32.totalorder %s372, %s375
      %p381 = scmp.eq.s32.totalorder %s27, 0
      %p382 = por %p380, %p381
      %p383 = scmp.ne.s32.totalorder %s372, %s375
      %p384 = scmp.eq.s32.totalorder %s32, 7
      %p385 = por %p383, %p384
      %p386 = scmp.ne.s32.totalorder %s375, %s376
      %p387 = scmp.eq.s32.totalorder %s32, 0
      %p388 = por %p386, %p387
      %p389 = scmp.ne.s32.totalorder %s375, %s376
      %p390 = scmp.eq.s32.totalorder %s33, 7
      %p391 = por %p389, %p390
      %p393 = scmp.ne.s32.totalorder %s376, %s392
      %p394 = scmp.eq.s32.totalorder %s33, 0
      %p395 = por %p393, %p394
      %p396 = scmp.le.s32.totalorder 1, %s27
      %p397 = scmp.lt.s32.totalorder %s27, 9
      %p398 = pnand %p396, %p397
      %p399 = pneg %p398
      // Predicated region
      $region9: #{encoder_forward.1} parent=5 // pred_check
        _
      $region10: #{encoder_forward.1} parent=5 // pred_check_branch
        %401 = sbr.rel (%p398) target = $region12
      $region11: #{encoder_forward.1} parent=5 // pred_region
        %s402 = ssub.s32 %s27, 1
        // Predicated region
        $region13: #{encoder_forward.1} parent=11 // pred_check
          %p403 = pneg %p164
        $region14: #{encoder_forward.1} parent=11 // pred_check_branch
          %405 = sbr.rel (%p403) target = $region16
        $region15: #{encoder_forward.1} parent=11 // pred_region
          _
        $region16: #{encoder_forward.1} parent=11 // pred_fallthru
          _
        // Predicated region
        $region17: #{encoder_forward.1} parent=11 // pred_check
          %p406 = pneg %p185
        $region18: #{encoder_forward.1} parent=11 // pred_check_branch
          %408 = sbr.rel (%p406) target = $region20
        $region19: #{encoder_forward.1} parent=11 // pred_region
          _
        $region20: #{encoder_forward.1} parent=11 // pred_fallthru
          _
        // Predicated region
        $region21: #{encoder_forward.1} parent=11 // pred_check
          %p409 = pneg %p206
        $region22: #{encoder_forward.1} parent=11 // pred_check_branch
          %411 = sbr.rel (%p409) target = $region24
        $region23: #{encoder_forward.1} parent=11 // pred_region
          _
        $region24: #{encoder_forward.1} parent=11 // pred_fallthru
          _
        // Predicated region
        $region25: #{encoder_forward.1} parent=11 // pred_check
          %p412 = pneg %p227
        $region26: #{encoder_forward.1} parent=11 // pred_check_branch
          %414 = sbr.rel (%p412) target = $region28
        $region27: #{encoder_forward.1} parent=11 // pred_region
          _
        $region28: #{encoder_forward.1} parent=11 // pred_fallthru
          _
        // Predicated region
        $region29: #{encoder_forward.1} parent=11 // pred_check
          %p415 = pneg %p248
        $region30: #{encoder_forward.1} parent=11 // pred_check_branch
          %417 = sbr.rel (%p415) target = $region32
        $region31: #{encoder_forward.1} parent=11 // pred_region
          _
        $region32: #{encoder_forward.1} parent=11 // pred_fallthru
          _
        // Predicated region
        $region33: #{encoder_forward.1} parent=11 // pred_check
          %p418 = pneg %p269
        $region34: #{encoder_forward.1} parent=11 // pred_check_branch
          %420 = sbr.rel (%p418) target = $region36
        $region35: #{encoder_forward.1} parent=11 // pred_region
          _
        $region36: #{encoder_forward.1} parent=11 // pred_fallthru
          _
        // Predicated region
        $region37: #{encoder_forward.1} parent=11 // pred_check
          %p421 = pneg %p290
        $region38: #{encoder_forward.1} parent=11 // pred_check_branch
          %423 = sbr.rel (%p421) target = $region40
        $region39: #{encoder_forward.1} parent=11 // pred_region
          _
        $region40: #{encoder_forward.1} parent=11 // pred_fallthru
          _
        // Predicated region
        $region41: #{encoder_forward.1} parent=11 // pred_check
          %p424 = pneg %p311
        $region42: #{encoder_forward.1} parent=11 // pred_check_branch
          %426 = sbr.rel (%p424) target = $region44
        $region43: #{encoder_forward.1} parent=11 // pred_region
          _
        $region44: #{encoder_forward.1} parent=11 // pred_fallthru
          _
        // Predicated region
        $region45: #{encoder_forward.1} parent=11 // pred_check
          %p427 = pneg %p332
        $region46: #{encoder_forward.1} parent=11 // pred_check_branch
          %429 = sbr.rel (%p427) target = $region48
        $region47: #{encoder_forward.1} parent=11 // pred_region
          _
        $region48: #{encoder_forward.1} parent=11 // pred_fallthru
          _
      $region12: #{encoder_forward.1} parent=5 // pred_fallthru
        _
      %p430 = scmp.lt.s32.totalorder %s27, 8
      // Predicated region
      $region49: #{encoder_forward.1} parent=5 // pred_check
        %p431 = pneg %p430
      $region50: #{encoder_forward.1} parent=5 // pred_check_branch
        %433 = sbr.rel (%p431) target = $region52
      $region51: #{encoder_forward.1} parent=5 // pred_region
        // Predicated region
        $region53: #{encoder_forward.1} parent=51 // pred_check
          %p434 = pneg %p59
        $region54: #{encoder_forward.1} parent=51 // pred_check_branch
          %436 = sbr.rel (%p434) target = $region56
        $region55: #{encoder_forward.1} parent=51 // pred_region
          %p437 = scmp.lt.s32.totalorder %s34, 1
          %s438 = scalar_select %p437, %s34, 1
          %s439 = smul.addr %s438, 8
          %s440 = scalar_lea.vmem %s0, %s439
        $region56: #{encoder_forward.1} parent=51 // pred_fallthru
          _
        // Predicated region
        $region57: #{encoder_forward.1} parent=51 // pred_check
          %p441 = pneg %p85
        $region58: #{encoder_forward.1} parent=51 // pred_check_branch
          %443 = sbr.rel (%p441) target = $region60
        $region59: #{encoder_forward.1} parent=51 // pred_region
          %p444 = scmp.lt.s32.totalorder %s35, 3
          %s445 = scalar_select %p444, %s35, 3
          %s446 = smul.addr %s445, 4
          %s447 = smul.addr %s446, 4
          %s448 = scalar_lea.vmem %s1, %s447
        $region60: #{encoder_forward.1} parent=51 // pred_fallthru
          _
        // Predicated region
        $region61: #{encoder_forward.1} parent=51 // pred_check
          %p449 = pneg %p111
        $region62: #{encoder_forward.1} parent=51 // pred_check_branch
          %451 = sbr.rel (%p449) target = $region64
        $region63: #{encoder_forward.1} parent=51 // pred_region
          %p452 = scmp.lt.s32.totalorder %s35, 3
          %s453 = scalar_select %p452, %s35, 3
          %s454 = scalar_lea.vmem %s2, %s453
        $region64: #{encoder_forward.1} parent=51 // pred_fallthru
          _
        // Predicated region
        $region65: #{encoder_forward.1} parent=51 // pred_check
          %p455 = pneg %p137
        $region66: #{encoder_forward.1} parent=51 // pred_check_branch
          %457 = sbr.rel (%p455) target = $region68
        $region67: #{encoder_forward.1} parent=51 // pred_region
          %p458 = scmp.lt.s32.totalorder %s35, 3
          %s459 = scalar_select %p458, %s35, 3
          %s460 = smul.addr %s459, 4
          %s461 = scalar_lea.vmem %s3, %s460
        $region68: #{encoder_forward.1} parent=51 // pred_fallthru
          _
      $region52: #{encoder_forward.1} parent=5 // pred_fallthru
        _
      %p462 = scmp.le.s32.totalorder 1, %s27
      %p463 = scmp.lt.s32.totalorder %s27, 9
      %p464 = pnand %p462, %p463
      %p465 = pneg %p464
      // Predicated region
      $region69: #{encoder_forward.1} parent=5 // pred_check
        _
      $region70: #{encoder_forward.1} parent=5 // pred_check_branch
        %467 = sbr.rel (%p464) target = $region72
      $region71: #{encoder_forward.1} parent=5 // pred_region
        %s468 = ssub.s32 %s27, 1
        %p469 = scmp.lt.s32.totalorder %s36, 1
        %s470 = scalar_select %p469, %s36, 1
        %s471 = smul.addr %s470, 8
        %s472 = scalar_lea.vmem %s0, %s471
        %p473 = pneg %p65
        %p474 = pneg %p62
        %p475 = scmp.lt.s32.totalorder %s37, 3
        %s476 = scalar_select %p475, %s37, 3
        %s477 = smul.addr %s476, 4
        %s478 = smul.addr %s477, 4
        %s479 = scalar_lea.vmem %s1, %s478
        %p480 = pneg %p91
        %p481 = pneg %p88
        %p482 = scmp.lt.s32.totalorder %s37, 3
        %s483 = scalar_select %p482, %s37, 3
        %s484 = scalar_lea.vmem %s2, %s483
        %p485 = pneg %p117
        %p486 = pneg %p114
        %p487 = scmp.lt.s32.totalorder %s37, 3
        %s488 = scalar_select %p487, %s37, 3
        %s489 = smul.addr %s488, 4
        %s490 = scalar_lea.vmem %s3, %s489
        %p491 = pneg %p143
        %p492 = pneg %p140
        %p493 = pneg %p164
        %p494 = pneg %p161
        %p495 = pneg %p185
        %p496 = pneg %p182
        %p497 = pneg %p206
        %p498 = pneg %p203
        %p499 = pneg %p227
        %p500 = pneg %p224
        %p501 = pneg %p248
        %p502 = pneg %p245
        %p503 = pneg %p269
        %p504 = pneg %p266
        %p505 = pneg %p290
        %p506 = pneg %p287
        %p507 = pneg %p311
        %p508 = pneg %p308
        %p509 = pneg %p332
        %p510 = pneg %p329
        %p511 = pneg %p358
        %p512 = pneg %p355
        %s513 = sand.u32 %s345, 1
        %s514 = scalar_lea.sflag [#allocation5], %s513
        %s515 = sand.u32 %s345, 1
        %s516 = smul.addr %s515, 8
        %s517 = scalar_lea.vmem [#allocation4], %s516
        %p518 = pneg %p388
        %p519 = pneg %p385
        %s520 = sand.u32 %s375, 1
        %s521 = scalar_lea.sflag [#allocation7], %s520
        %s522 = sand.u32 %s375, 1
        %s523 = smul.addr %s522, 8
        %s524 = scalar_lea.vmem [#allocation6], %s523
        %p525 = scmp.lt.s32.totalorder %s36, 1
        %s526 = scalar_select %p525, %s36, 1
        %s527 = smul.addr %s526, 8
        %s528 = scalar_lea.vmem %s0, %s527
        %p529 = scmp.lt.s32.totalorder %s37, 3
        %s530 = scalar_select %p529, %s37, 3
        %s531 = smul.addr %s530, 4
        %s532 = smul.addr %s531, 4
        %s533 = scalar_lea.vmem %s1, %s532
        %p534 = scmp.lt.s32.totalorder %s37, 3
        %s535 = scalar_select %p534, %s37, 3
        %s536 = scalar_lea.vmem %s2, %s535
        %p537 = scmp.lt.s32.totalorder %s37, 3
        %s538 = scalar_select %p537, %s37, 3
        %s539 = smul.addr %s538, 4
        %s540 = scalar_lea.vmem %s3, %s539
        %s541 = smul.u32 %s37, 2
        %s542 = sadd.s32 %s541, %s36
        %p544 = scmp.eq.s32.totalorder %s37, 0
        // Predicated region
        $region73: #{encoder_forward.1} parent=71 // pred_check
          %p545 = pneg %p544
        $region74: #{encoder_forward.1} parent=71 // pred_check_branch
          %547 = sbr.rel (%p545) target = $region76
        $region75: #{encoder_forward.1} parent=71 // pred_region
          %v548 = vld [vmem:[%s528] sm:$0xff]
          %v549 = vpack.c.bf16 %v548, %v548
          %vm550 = vcmask 257024
          %551 = vst.msk [vmem:[#allocation2] sm:$0xf] %vm550, %v549
          %vm552 = vcmask 261120
          %553 = vst.msk [vmem:[#allocation3] sm:$0xff] %vm552, 0.0
        $region76: #{encoder_forward.1} parent=71 // pred_fallthru
          _
        %v554 = vld [vmem:[#allocation2] sm:$0xf]
        %v555 = vld [vmem:[%s533] sm:$0xf]
        %v556 = vld [vmem:[%s533 + $0x4] sm:$0xf]
        %v557 = vld [vmem:[%s533 + $0x8] sm:$0xf]
        %v558 = vld [vmem:[%s533 + $0xc] sm:$0xf]
        %v559 = vld [vmem:[%s536] sm:$0x1]
        %v561 = vlaneseq
        %v562 = vshrl.u32 %v561, 7
        %v563 = vsub.s32 0, %v562
        %v564 = vrot.slane %v559, %v563
        %v570 = vunpack.c.l.b16 %v555
        %v571 = vunpack.c.l.b16 %v556
        %v572 = vunpack.c.l.b16 %v557
        %v573 = vunpack.c.l.b16 %v558
        %v574 = vpack.c.b16 %v571, %v570
        %v575 = vpack.c.b16 %v573, %v572
        %vm578 = vcmask 261120
        %v580 = vsel %vm578, %v554, 0
        %582 = vmatprep.subr.bf16.mxu0 0
        %583 = vmatpush1.bf16.msra.mxu0 0
        %584 = vmatprep.subr.bf16.mxu0 0
        %585 = vmatpush1.bf16.msra.mxu0 0
        %586 = vmatprep.subr.bf16.mxu0 0
        %587 = vmatpush1.bf16.msra.mxu0 0
        %588 = vmatprep.subr.bf16.mxu0 0
        %589 = vmatpush1.bf16.msra.mxu0 0
        %590 = vmatprep.subr.bf16.mxu0 0
        %591 = vmatpush1.bf16.msra.mxu0 0
        %592 = vmatprep.subr.bf16.mxu0 0
        %593 = vmatpush1.bf16.msra.mxu0 0
        %594 = vmatprep.subr.bf16.mxu0 0
        %595 = vmatpush1.bf16.msra.mxu0 %v575
        %596 = vmatprep.subr.bf16.mxu0 0
        %597 = vmatpush1.bf16.msra.mxu0 %v574
        %598 = vmatprep.subr.bf16.mxu0 0
        %599 = vmatpush2.bf16.msra.mxu0 0
        %600 = vmatprep.subr.bf16.mxu0 0
        %601 = vmatpush2.bf16.msra.mxu0 0
        %602 = vmatprep.subr.bf16.mxu0 0
        %603 = vmatpush2.bf16.msra.mxu0 0
        %604 = vmatprep.subr.bf16.mxu0 0
        %605 = vmatpush2.bf16.msra.mxu0 0
        %606 = vmatprep.subr.bf16.mxu0 0
        %607 = vmatpush2.bf16.msra.mxu0 0
        %608 = vmatprep.subr.bf16.mxu0 0
        %609 = vmatpush2.bf16.msra.mxu0 0
        %610 = vmatprep.subr.bf16.mxu0 0
        %611 = vmatpush2.bf16.msra.mxu0 0
        %612 = vmatprep.subr.bf16.mxu0 0
        %613 = vmatpush2.bf16.msra.mxu0 0
        %614 = vmatprep.mubr.bf16.mxu0 0
        %615 = vmatmul.mubr.bf16.gmra.mxu0 %v580
        %v616 = vpop.f32.mrf.mxu0
        %v617 = vadd.f32 %v564, %v616
        %v618 = vpop.f32.mrf.mxu0
        %v619 = vpop.f32.mrf.mxu0
        %v620 = vpop.f32.mrf.mxu0
        %621 = vdwg.mxu0
        %v622 = vmul.f32 %v617, 0.35355338
        %v623 = vpack.c.bf16 %v622, %v622
        %v624 = vpack.c.bf16 %v617, %v617
        %626 = vrot.lane.b32.xlu0 %v624, 120
        %v627 = vpop.permute.xlu0 %626
        %vm628 = vcmask 64512
        %v630 = vsel %vm628, %v623, 0
        %v633 = vsel %vm628, %v627, 0
        %635 = vmatprep.subr.bf16.mxu0 0
        %636 = vmatpush1.bf16.xpose.msra.mxu0 0
        %637 = vmatprep.subr.bf16.mxu0 0
        %638 = vmatpush1.bf16.xpose.msra.mxu0 0
        %639 = vmatprep.subr.bf16.mxu0 0
        %640 = vmatpush1.bf16.xpose.msra.mxu0 0
        %641 = vmatprep.subr.bf16.mxu0 0
        %642 = vmatpush1.bf16.xpose.msra.mxu0 0
        %643 = vmatprep.subr.bf16.mxu0 0
        %644 = vmatpush1.bf16.xpose.msra.mxu0 0
        %645 = vmatprep.subr.bf16.mxu0 0
        %646 = vmatpush1.bf16.xpose.msra.mxu0 0
        %647 = vmatprep.subr.bf16.mxu0 0
        %648 = vmatpush1.bf16.xpose.msra.mxu0 0
        %649 = vmatprep.subr.bf16.mxu0 0
        %650 = vmatpush1.bf16.xpose.msra.mxu0 %v633
        %651 = vmatprep.subr.bf16.mxu0 0
        %652 = vmatpush2.bf16.xpose.msra.mxu0 0
        %653 = vmatprep.subr.bf16.mxu0 0
        %654 = vmatpush2.bf16.xpose.msra.mxu0 0
        %655 = vmatprep.subr.bf16.mxu0 0
        %656 = vmatpush2.bf16.xpose.msra.mxu0 0
        %657 = vmatprep.subr.bf16.mxu0 0
        %658 = vmatpush2.bf16.xpose.msra.mxu0 0
        %659 = vmatprep.subr.bf16.mxu0 0
        %660 = vmatpush2.bf16.xpose.msra.mxu0 0
        %661 = vmatprep.subr.bf16.mxu0 0
        %662 = vmatpush2.bf16.xpose.msra.mxu0 0
        %663 = vmatprep.subr.bf16.mxu0 0
        %664 = vmatpush2.bf16.xpose.msra.mxu0 0
        %665 = vmatprep.subr.bf16.mxu0 0
        %666 = vmatpush2.bf16.xpose.msra.mxu0 0
        %667 = vmatprep.mubr.bf16.mxu0 0
        %668 = vmatmul.mubr.bf16.gmra.mxu0 %v630
        %v669 = vpop.f32.mrf.mxu0
        %v670 = vadd.f32 0.0, %v669
        %v671 = vpop.f32.mrf.mxu0
        %v672 = vpop.f32.mrf.mxu0
        %v673 = vpop.f32.mrf.mxu0
        %674 = vdwg.mxu0
        %675 = vst.msk [vmem:[%s524] sm:$0xff] %vm628, %v670
        %v676 = vsel %vm628, %v670, -inf
        %677 = vmax.xlane.f32.xlu0 %v676
        %v678 = vpop.xlane.xlu0 %677
        %v679 = vsub.f32 %v670, %v678
        %v680 = vmul.f32 %v679, 1.442695
        %v681 = vpow.pop %v680
        %v682 = vsel %vm628, %v681, 0.0
        %683 = vadd.xlane.f32.xlu0 %v682
        %v684 = vpop.xlane.xlu0 %683
        %v685 = vrcp.pop %v684
        %v686 = vmul.f32 %v681, %v685
        %v687 = vpack.c.bf16 %v686, %v686
        %688 = vrot.lane.b32.xlu0 %v624, 112
        %v689 = vpop.permute.xlu0 %688
        %v691 = vsel %vm628, %v687, 0
        %vm693 = vcmask 1043456
        %v695 = vsel %vm693, %v689, 0
        %697 = vmatprep.subr.bf16.mxu0 0
        %698 = vmatpush1.bf16.msra.mxu0 0
        %699 = vmatprep.subr.bf16.mxu0 0
        %700 = vmatpush1.bf16.msra.mxu0 0
        %701 = vmatprep.subr.bf16.mxu0 0
        %702 = vmatpush1.bf16.msra.mxu0 0
        %703 = vmatprep.subr.bf16.mxu0 0
        %704 = vmatpush1.bf16.msra.mxu0 0
        %705 = vmatprep.subr.bf16.mxu0 0
        %706 = vmatpush1.bf16.msra.mxu0 0
        %707 = vmatprep.subr.bf16.mxu0 0
        %708 = vmatpush1.bf16.msra.mxu0 0
        %709 = vmatprep.subr.bf16.mxu0 0
        %710 = vmatpush1.bf16.msra.mxu0 0
        %711 = vmatprep.subr.bf16.mxu0 0
        %712 = vmatpush1.bf16.msra.mxu0 %v695
        %713 = vmatprep.subr.bf16.mxu0 0
        %714 = vmatpush2.bf16.msra.mxu0 0
        %715 = vmatprep.subr.bf16.mxu0 0
        %716 = vmatpush2.bf16.msra.mxu0 0
        %717 = vmatprep.subr.bf16.mxu0 0
        %718 = vmatpush2.bf16.msra.mxu0 0
        %719 = vmatprep.subr.bf16.mxu0 0
        %720 = vmatpush2.bf16.msra.mxu0 0
        %721 = vmatprep.subr.bf16.mxu0 0
        %722 = vmatpush2.bf16.msra.mxu0 0
        %723 = vmatprep.subr.bf16.mxu0 0
        %724 = vmatpush2.bf16.msra.mxu0 0
        %725 = vmatprep.subr.bf16.mxu0 0
        %726 = vmatpush2.bf16.msra.mxu0 0
        %727 = vmatprep.subr.bf16.mxu0 0
        %728 = vmatpush2.bf16.msra.mxu0 0
        %729 = vmatprep.mubr.bf16.mxu0 0
        %730 = vmatmul.mubr.bf16.gmra.mxu0 %v691
        %v731 = vpop.f32.mrf.mxu0
        %v732 = vadd.f32 0.0, %v731
        %v733 = vpop.f32.mrf.mxu0
        %v734 = vpop.f32.mrf.mxu0
        %v735 = vpop.f32.mrf.mxu0
        %736 = vdwg.mxu0
        %v737 = vpack.c.bf16 %v732, %v732
        %v738 = vld [vmem:[#allocation3] sm:$0xff]
        %v739 = vld [vmem:[%s540] sm:$0xf]
        %v741 = vsel %vm628, %v737, 0
        %v744 = vsel %vm693, %v739, 0
        %746 = vmatprep.subr.bf16.mxu0 0
        %747 = vmatpush1.bf16.msra.mxu0 0
        %748 = vmatprep.subr.bf16.mxu0 0
        %749 = vmatpush1.bf16.msra.mxu0 0
        %750 = vmatprep.subr.bf16.mxu0 0
        %751 = vmatpush1.bf16.msra.mxu0 0
        %752 = vmatprep.subr.bf16.mxu0 0
        %753 = vmatpush1.bf16.msra.mxu0 0
        %754 = vmatprep.subr.bf16.mxu0 0
        %755 = vmatpush1.bf16.msra.mxu0 0
        %756 = vmatprep.subr.bf16.mxu0 0
        %757 = vmatpush1.bf16.msra.mxu0 0
        %758 = vmatprep.subr.bf16.mxu0 0
        %759 = vmatpush1.bf16.msra.mxu0 0
        %760 = vmatprep.subr.bf16.mxu0 0
        %761 = vmatpush1.bf16.msra.mxu0 %v744
        %762 = vmatprep.subr.bf16.mxu0 0
        %763 = vmatpush2.bf16.msra.mxu0 0
        %764 = vmatprep.subr.bf16.mxu0 0
        %765 = vmatpush2.bf16.msra.mxu0 0
        %766 = vmatprep.subr.bf16.mxu0 0
        %767 = vmatpush2.bf16.msra.mxu0 0
        %768 = vmatprep.subr.bf16.mxu0 0
        %769 = vmatpush2.bf16.msra.mxu0 0
        %770 = vmatprep.subr.bf16.mxu0 0
        %771 = vmatpush2.bf16.msra.mxu0 0
        %772 = vmatprep.subr.bf16.mxu0 0
        %773 = vmatpush2.bf16.msra.mxu0 0
        %774 = vmatprep.subr.bf16.mxu0 0
        %775 = vmatpush2.bf16.msra.mxu0 0
        %776 = vmatprep.subr.bf16.mxu0 0
        %777 = vmatpush2.bf16.msra.mxu0 0
        %778 = vmatprep.mubr.bf16.mxu0 0
        %779 = vmatmul.mubr.bf16.gmra.mxu0 %v741
        %v780 = vpop.f32.mrf.mxu0
        %v781 = vadd.f32 0.0, %v780
        %v782 = vpop.f32.mrf.mxu0
        %v783 = vpop.f32.mrf.mxu0
        %v784 = vpop.f32.mrf.mxu0
        %785 = vdwg.mxu0
        %v786 = vadd.f32 %v738, %v781
        %787 = vst.msk [vmem:[#allocation3] sm:$0xff] %vm578, %v786
        %p788 = scmp.eq.s32.totalorder %s37, 3
        // Predicated region
        $region77: #{encoder_forward.1} parent=71 // pred_check
          %p789 = pneg %p788
        $region78: #{encoder_forward.1} parent=71 // pred_check_branch
          %791 = sbr.rel (%p789) target = $region80
        $region79: #{encoder_forward.1} parent=71 // pred_region
          %v792 = vld [vmem:[%s528] sm:$0xff]
          %v793 = vld [vmem:[#allocation3] sm:$0xff]
          %v794 = vld [vmem:[%s4] sm:$0x1]
          %v796 = vlaneseq
          %v797 = vshrl.u32 %v796, 7
          %v798 = vsub.s32 0, %v797
          %v799 = vrot.slane %v794, %v798
          %v801 = vadd.f32 %v793, %v799
          %v802 = vadd.f32 %v801, %v792
          %v803 = vld [vmem:[%s5] sm:$0x1]
          %v804 = vld [vmem:[%s6] sm:$0x1]
          %v805 = vsel %vm578, %v802, 0.0
          %806 = vadd.xlane.f32.xlu0 %v805
          %v807 = vpop.xlane.xlu0 %806
          %v808 = vrcp.pop 32.0
          %v809 = vmul.f32 %v807, %v808
          %v810 = vsub.f32 %v802, %v809
          %v811 = vmul.f32 %v810, %v810
          %v812 = vsel %vm578, %v811, 0.0
          %813 = vadd.xlane.f32.xlu0 %v812
          %v814 = vpop.xlane.xlu0 %813
          %v815 = vmul.f32 %v814, %v808
          %v816 = vadd.f32 %v815, 1e-05
          %v817 = vrsqrt.pop %v816
          %v818 = vmul.f32 %v810, %v817
          %v820 = vlaneseq
          %v821 = vshrl.u32 %v820, 7
          %v822 = vsub.s32 0, %v821
          %v823 = vrot.slane %v803, %v822
          %v825 = vmul.f32 %v818, %v823
          %v827 = vlaneseq
          %v828 = vshrl.u32 %v827, 7
          %v829 = vsub.s32 0, %v828
          %v830 = vrot.slane %v804, %v829
          %v832 = vadd.f32 %v825, %v830
          %v833 = vpack.c.bf16 %v832, %v832
          %v834 = vld [vmem:[%s7] sm:$0xf]
          %v835 = vld [vmem:[%s7 + $0x4] sm:$0xf]
          %v836 = vld [vmem:[%s7 + $0x8] sm:$0xf]
          %v837 = vld [vmem:[%s7 + $0xc] sm:$0xf]
          %v838 = vld [vmem:[%s8] sm:$0x1]
          %v840 = vlaneseq
          %v841 = vshrl.u32 %v840, 7
          %v842 = vsub.s32 0, %v841
          %v843 = vrot.slane %v838, %v842
          %v849 = vunpack.c.l.b16 %v834
          %v850 = vunpack.c.l.b16 %v835
          %v851 = vunpack.c.l.b16 %v836
          %v852 = vunpack.c.l.b16 %v837
          %v853 = vpack.c.b16 %v850, %v849
          %v854 = vpack.c.b16 %v852, %v851
          %v858 = vsel %vm578, %v833, 0
          %860 = vmatprep.subr.bf16.mxu0 0
          %861 = vmatpush1.bf16.msra.mxu0 0
          %862 = vmatprep.subr.bf16.mxu0 0
          %863 = vmatpush1.bf16.msra.mxu0 0
          %864 = vmatprep.subr.bf16.mxu0 0
          %865 = vmatpush1.bf16.msra.mxu0 0
          %866 = vmatprep.subr.bf16.mxu0 0
          %867 = vmatpush1.bf16.msra.mxu0 0
          %868 = vmatprep.subr.bf16.mxu0 0
          %869 = vmatpush1.bf16.msra.mxu0 0
          %870 = vmatprep.subr.bf16.mxu0 0
          %871 = vmatpush1.bf16.msra.mxu0 0
          %872 = vmatprep.subr.bf16.mxu0 0
          %873 = vmatpush1.bf16.msra.mxu0 %v854
          %874 = vmatprep.subr.bf16.mxu0 0
          %875 = vmatpush1.bf16.msra.mxu0 %v853
          %876 = vmatprep.subr.bf16.mxu0 0
          %877 = vmatpush2.bf16.msra.mxu0 0
          %878 = vmatprep.subr.bf16.mxu0 0
          %879 = vmatpush2.bf16.msra.mxu0 0
          %880 = vmatprep.subr.bf16.mxu0 0
          %881 = vmatpush2.bf16.msra.mxu0 0
          %882 = vmatprep.subr.bf16.mxu0 0
          %883 = vmatpush2.bf16.msra.mxu0 0
          %884 = vmatprep.subr.bf16.mxu0 0
          %885 = vmatpush2.bf16.msra.mxu0 0
          %886 = vmatprep.subr.bf16.mxu0 0
          %887 = vmatpush2.bf16.msra.mxu0 0
          %888 = vmatprep.subr.bf16.mxu0 0
          %889 = vmatpush2.bf16.msra.mxu0 0
          %890 = vmatprep.subr.bf16.mxu0 0
          %891 = vmatpush2.bf16.msra.mxu0 0
          %892 = vmatprep.mubr.bf16.mxu0 0
          %893 = vmatmul.mubr.bf16.gmra.mxu0 %v858
          %v894 = vpop.f32.mrf.mxu0
          %v895 = vadd.f32 %v843, %v894
          %v896 = vpop.f32.mrf.mxu0
          %v897 = vpop.f32.mrf.mxu0
          %v898 = vpop.f32.mrf.mxu0
          %899 = vdwg.mxu0
          %v900 = vmax.f32 %v895, 0.0
          %v901 = vpack.c.bf16 %v900, %v900
          %v902 = vld [vmem:[%s9] sm:$0xf]
          %v903 = vld [vmem:[%s9 + $0x4] sm:$0xf]
          %v904 = vld [vmem:[%s9 + $0x8] sm:$0xf]
          %v905 = vld [vmem:[%s9 + $0xc] sm:$0xf]
          %v906 = vld [vmem:[%s9 + $0x10] sm:$0xf]
          %v907 = vld [vmem:[%s9 + $0x14] sm:$0xf]
          %v908 = vld [vmem:[%s9 + $0x18] sm:$0xf]
          %v909 = vld [vmem:[%s9 + $0x1c] sm:$0xf]
          %v910 = vld [vmem:[%s10] sm:$0x1]
          %v912 = vlaneseq
          %v913 = vshrl.u32 %v912, 7
          %v914 = vsub.s32 0, %v913
          %v915 = vrot.slane %v910, %v914
          %v925 = vunpack.c.l.b16 %v902
          %v926 = vunpack.c.l.b16 %v903
          %v927 = vunpack.c.l.b16 %v904
          %v928 = vunpack.c.l.b16 %v905
          %v929 = vunpack.c.l.b16 %v906
          %v930 = vunpack.c.l.b16 %v907
          %v931 = vunpack.c.l.b16 %v908
          %v932 = vunpack.c.l.b16 %v909
          %v933 = vpack.c.b16 %v926, %v925
          %v934 = vpack.c.b16 %v928, %v927
          %v935 = vpack.c.b16 %v930, %v929
          %v936 = vpack.c.b16 %v932, %v931
          %vm941 = vcmask 523264
          %v943 = vsel %vm941, %v901, 0
          %945 = vmatprep.subr.bf16.mxu0 0
          %946 = vmatpush1.bf16.msra.mxu0 0
          %947 = vmatprep.subr.bf16.mxu0 0
          %948 = vmatpush1.bf16.msra.mxu0 0
          %949 = vmatprep.subr.bf16.mxu0 0
          %950 = vmatpush1.bf16.msra.mxu0 0
          %951 = vmatprep.subr.bf16.mxu0 0
          %952 = vmatpush1.bf16.msra.mxu0 0
          %953 = vmatprep.subr.bf16.mxu0 0
          %954 = vmatpush1.bf16.msra.mxu0 %v936
          %955 = vmatprep.subr.bf16.mxu0 0
          %956 = vmatpush1.bf16.msra.mxu0 %v935
          %957 = vmatprep.subr.bf16.mxu0 0
          %958 = vmatpush1.bf16.msra.mxu0 %v934
          %959 = vmatprep.subr.bf16.mxu0 0
          %960 = vmatpush1.bf16.msra.mxu0 %v933
          %961 = vmatprep.subr.bf16.mxu0 0
          %962 = vmatpush2.bf16.msra.mxu0 0
          %963 = vmatprep.subr.bf16.mxu0 0
          %964 = vmatpush2.bf16.msra.mxu0 0
          %965 = vmatprep.subr.bf16.mxu0 0
          %966 = vmatpush2.bf16.msra.mxu0 0
          %967 = vmatprep.subr.bf16.mxu0 0
          %968 = vmatpush2.bf16.msra.mxu0 0
          %969 = vmatprep.subr.bf16.mxu0 0
          %970 = vmatpush2.bf16.msra.mxu0 0
          %971 = vmatprep.subr.bf16.mxu0 0
          %972 = vmatpush2.bf16.msra.mxu0 0
          %973 = vmatprep.subr.bf16.mxu0 0
          %974 = vmatpush2.bf16.msra.mxu0 0
          %975 = vmatprep.subr.bf16.mxu0 0
          %976 = vmatpush2.bf16.msra.mxu0 0
          %977 = vmatprep.mubr.bf16.mxu0 0
          %978 = vmatmul.mubr.bf16.gmra.mxu0 %v943
          %v979 = vpop.f32.mrf.mxu0
          %v980 = vadd.f32 %v915, %v979
          %v981 = vpop.f32.mrf.mxu0
          %v982 = vpop.f32.mrf.mxu0
          %v983 = vpop.f32.mrf.mxu0
          %984 = vdwg.mxu0
          %v985 = vadd.f32 %v980, %v832
          %v986 = vld [vmem:[%s11] sm:$0x1]
          %v987 = vld [vmem:[%s12] sm:$0x1]
          %v988 = vsel %vm578, %v985, 0.0
          %989 = vadd.xlane.f32.xlu0 %v988
          %v990 = vpop.xlane.xlu0 %989
          %v991 = vmul.f32 %v990, %v808
          %v992 = vsub.f32 %v985, %v991
          %v993 = vmul.f32 %v992, %v992
          %v994 = vsel %vm578, %v993, 0.0
          %995 = vadd.xlane.f32.xlu0 %v994
          %v996 = vpop.xlane.xlu0 %995
          %v997 = vmul.f32 %v996, %v808
          %v998 = vadd.f32 %v997, 1e-05
          %v999 = vrsqrt.pop %v998
          %v1000 = vmul.f32 %v992, %v999
          %v1002 = vlaneseq
          %v1003 = vshrl.u32 %v1002, 7
          %v1004 = vsub.s32 0, %v1003
          %v1005 = vrot.slane %v986, %v1004
          %v1007 = vmul.f32 %v1000, %v1005
          %v1009 = vlaneseq
          %v1010 = vshrl.u32 %v1009, 7
          %v1011 = vsub.s32 0, %v1010
          %v1012 = vrot.slane %v987, %v1011
          %v1014 = vadd.f32 %v1007, %v1012
          %1015 = vst.msk [vmem:[%s517] sm:$0xff] %vm578, %v1014
        $region80: #{encoder_forward.1} parent=71 // pred_fallthru
          _
        %s1016 = sand.u32 %s345, 1
        %s1017 = scalar_lea.sflag [#allocation5], %s1016
        %s1018 = sand.u32 %s345, 1
        %s1019 = smul.addr %s1018, 8
        %s1020 = scalar_lea.vmem [#allocation4], %s1019
        %s1021 = sand.u32 %s375, 1
        %s1022 = scalar_lea.sflag [#allocation7], %s1021
        %s1023 = sand.u32 %s375, 1
        %s1024 = smul.addr %s1023, 8
        %s1025 = scalar_lea.vmem [#allocation6], %s1024
        // Predicated region
        $region81: #{encoder_forward.1} parent=71 // pred_check
          %p1026 = pneg %p355
        $region82: #{encoder_forward.1} parent=71 // pred_check_branch
          %1028 = sbr.rel (%p1026) target = $region84
        $region83: #{encoder_forward.1} parent=71 // pred_region
          %s1030 = ssub.s32 128, 128
          %1031 = vsyncadd %s1017, %s1030
          %s1032 = smul.addr %s36, 128
          %s1033 = scalar_lea.hbm %s13, %s1032
          %s1035 = sshll.u32 %s1020, 4
          %s1036 = int_to_ptr.vmem [resolvable:$true] %s1035
          %1038 = dma.vmem_to_hbm [thread:$0]  %s1036, 128, %s1033, %s1017
        $region84: #{encoder_forward.1} parent=71 // pred_fallthru
          _
        // Predicated region
        $region85: #{encoder_forward.1} parent=71 // pred_check
          %p1039 = pneg %p385
        $region86: #{encoder_forward.1} parent=71 // pred_check_branch
          %1041 = sbr.rel (%p1039) target = $region88
        $region87: #{encoder_forward.1} parent=71 // pred_region
          %s1042 = smul.u32 %s37, 2
          %s1043 = sadd.s32 %s1042, %s36
          %s1045 = ssub.s32 128, 128
          %1046 = vsyncadd %s1022, %s1045
          %s1047 = smul.addr %s1043, 128
          %s1048 = scalar_lea.hbm %s14, %s1047
          %s1050 = sshll.u32 %s1025, 4
          %s1051 = int_to_ptr.vmem [resolvable:$true] %s1050
          %1053 = dma.vmem_to_hbm [thread:$0]  %s1051, 128, %s1048, %s1022
        $region88: #{encoder_forward.1} parent=71 // pred_fallthru
          _
      $region72: #{encoder_forward.1} parent=5 // pred_fallthru
        _
      %p1054 = scmp.le.s32.totalorder 2, %s27
      // Predicated region
      $region89: #{encoder_forward.1} parent=5 // pred_check
        %p1055 = pneg %p1054
      $region90: #{encoder_forward.1} parent=5 // pred_check_branch
        %1057 = sbr.rel (%p1055) target = $region92
      $region91: #{encoder_forward.1} parent=5 // pred_region
        %s1058 = ssub.s32 %s27, 2
        // Predicated region
        $region93: #{encoder_forward.1} parent=91 // pred_check
          %p1059 = pneg %p361
        $region94: #{encoder_forward.1} parent=91 // pred_check_branch
          %1061 = sbr.rel (%p1059) target = $region96
        $region95: #{encoder_forward.1} parent=91 // pred_region
          %s1062 = sand.u32 %s346, 1
          %s1063 = scalar_lea.sflag [#allocation5], %s1062
          %s1064 = sand.u32 %s346, 1
          %s1065 = smul.addr %s1064, 8
          %s1066 = scalar_lea.vmem [#allocation4], %s1065
          %1067 = dma.done %s1063, 128
        $region96: #{encoder_forward.1} parent=91 // pred_fallthru
          _
        // Predicated region
        $region97: #{encoder_forward.1} parent=91 // pred_check
          %p1068 = pneg %p391
        $region98: #{encoder_forward.1} parent=91 // pred_check_branch
          %1070 = sbr.rel (%p1068) target = $region100
        $region99: #{encoder_forward.1} parent=91 // pred_region
          %s1071 = sand.u32 %s376, 1
          %s1072 = scalar_lea.sflag [#allocation7], %s1071
          %s1073 = sand.u32 %s376, 1
          %s1074 = smul.addr %s1073, 8
          %s1075 = scalar_lea.vmem [#allocation6], %s1074
          %1076 = dma.done %s1072, 128
        $region100: #{encoder_forward.1} parent=91 // pred_fallthru
          _
      $region92: #{encoder_forward.1} parent=5 // pred_fallthru
        _
    $region6: #{encoder_forward.1} parent=1 // loop_footer
      %s31 = sadd.s32 1, %s27
    $region7: #{encoder_forward.1} parent=1 // loop_footer_branch
      %26 = sbr.rel target = $region3
    $region8: #{encoder_forward.1} parent=1 // loop_exit
      _
    %1077 = vsyncpa [#allocation5], 1
    %s1078 = scalar_lea.sflag [#allocation5], 1
    %1079 = vsyncpa %s1078, 1
    %1080 = vsyncpa [#allocation7], 1
    %s1081 = scalar_lea.sflag [#allocation7], 1
    %1082 = vsyncpa %s1081, 1

</llo_original>
